<compile_context>
chip_gen: v7x
topology: tpu7x:2x2x1
jax: 0.10.0
libtpu: 0.0.40
codegen_flags: <defaults>
</compile_context>

<pallas_src>
import functools

import jax
import jax.numpy as jnp
import numpy as np
from jax.experimental import pallas as pl
from jax.experimental.pallas import tpu as pltpu

EPS = 1e-3


# ----------------------------------------------------------------------------
# Pallas kernel: one full CrdDsBlock forward for a single batch element,
# operating on a lane-dense (H, W*C) tile.
# ----------------------------------------------------------------------------
def crd_ds_block_kernel(x_ref, dw1_ref, dw2_ref, c1_ref, b1_ref,
                        dw3_ref, dw4_ref, c2_ref, b2_ref, out_ref,
                        *, dilation, channels):
    x = x_ref[0]                      # (H, W*C) float32, lane-dense
    H, WC = x.shape
    C = channels

    # H-edge validity masks, built ONCE (only shifts +-dilation and +-1 occur).
    row = jax.lax.broadcasted_iota(jnp.int32, (H, 1), 0)

    def row_masks(d):
        return ((row >= d).astype(x.dtype),        # valid rows when reading h-d
                (row < H - d).astype(x.dtype))     # valid rows when reading h+d

    top_1, bot_1 = row_masks(1)
    top_d, bot_d = (top_1, bot_1) if dilation == 1 else row_masks(dilation)

    def dw_h(v, w_ref, d, m_top, m_bot):
        # Depthwise (3,1) conv: sublane rolls (XLU) + hoisted row masks.
        up = pltpu.roll(v, shift=d % H, axis=0) * m_top       # reads row h-d
        dn = pltpu.roll(v, shift=(-d) % H, axis=0) * m_bot    # reads row h+d
        return w_ref[0:1] * up + w_ref[1:2] * v + w_ref[2:3] * dn

    def dw_w(v, w_ref, d):
        # Depthwise (1,3) conv: lane rolls only — the W-edge masks are already
        # folded into the tap-0 / tap-2 rows of w_ref at parameter-prep time.
        s = d * C
        left = pltpu.roll(v, shift=s % WC, axis=1)            # reads pixel w-d
        right = pltpu.roll(v, shift=(-s) % WC, axis=1)        # reads pixel w+d
        return w_ref[0:1] * left + w_ref[1:2] * v + w_ref[2:3] * right

    def pw(v, w_ref, b_ref):
        # 1x1 conv with both surrounding BatchNorms folded in, as a single
        # (H, WC) @ (WC, WC) block-diagonal MXU matmul + bias.
        return jnp.dot(v, w_ref[...],
                       preferred_element_type=jnp.float32,
                       precision=jax.lax.Precision.HIGHEST) + b_ref[...]

    y = dw_h(x, dw1_ref, dilation, top_d, bot_d)
    y = jnp.maximum(y, 0.0)
    y = dw_w(y, dw2_ref, dilation)
    y = pw(y, c1_ref, b1_ref)         # BN1 + 1x1 conv + BN2 (folded)
    y = jnp.maximum(y, 0.0)
    y = dw_h(y, dw3_ref, 1, top_1, bot_1)
    y = jnp.maximum(y, 0.0)
    y = dw_w(y, dw4_ref, 1)
    y = pw(y, c2_ref, b2_ref)         # BN3 + 1x1 conv + BN4 (folded)
    # TODO(synk): Dropout2d with drop_prob > 0 (training-mode channel dropout)
    # is not implemented; the module's default p == 0 inference path skips it.
    out_ref[0] = jnp.maximum(y + x, 0.0)


# ----------------------------------------------------------------------------
# Wrapper: NHWC in/out, free reshape to a lane-dense (B, H, W*C) layout,
# grid over batch (parallel -> megacore on v7x).
# ----------------------------------------------------------------------------
def crd_ds_block(x_nhwc, kernel_params, dilation):
    """NHWC in / NHWC out (equivalent to the PyTorch NCHW module up to
    layout); keeping NHWC end-to-end avoids transpose passes around the
    kernel."""
    B, H, W, C = x_nhwc.shape
    WC = W * C
    # Lane-dense requirement: keep the last block dim a multiple of 128 when
    # generalizing (pad C or regroup W) so stores stay unmasked.
    assert WC % 128 == 0, "W*C must be a multiple of 128 for lane-dense tiles"
    x = x_nhwc.reshape(B, H, WC)      # contiguous merge of (W, C) -> free

    # NOTE: at realistic image sizes add an H-tile grid axis with a
    # (dilation + 1)-row recompute halo per side (required on v7x: 64 MiB
    # VMEM, 2 TCs) and set vmem_limit_bytes; at the demo size the whole-image
    # block per batch element is the largest block that fits = lowest per-step
    # overhead (each grid step costs ~0.35 us fixed).
    in_specs = [pl.BlockSpec((1, H, WC), lambda b: (b, 0, 0))]
    in_specs += [pl.BlockSpec(p.shape, lambda b: (0, 0))
                 for p in kernel_params]

    out = pl.pallas_call(
        functools.partial(crd_ds_block_kernel, dilation=dilation, channels=C),
        out_shape=jax.ShapeDtypeStruct((B, H, WC), x.dtype),
        grid=(B,),
        in_specs=in_specs,
        out_specs=pl.BlockSpec((1, H, WC), lambda b: (b, 0, 0)),
        compiler_params=pltpu.CompilerParams(
            dimension_semantics=("parallel",)),
    )(x, *kernel_params)
    return out.reshape(B, H, W, C)


# ----------------------------------------------------------------------------
# Deterministic parameter init (PyTorch-shaped) + conversion to kernel params
# (BN folding, lane tiling, W-edge-mask folding, block-diagonal pw weight).
# ----------------------------------------------------------------------------
def init_torch_params(key, C):
    ks = jax.random.split(key, 10)

    def dw(k, kh, kw):   # depthwise conv weight (C, 1, kh, kw)
        return 0.2 * jax.random.normal(k, (C, 1, kh, kw), jnp.float32)

    def pw(k):           # 1x1 conv weight (Cout, Cin, 1, 1)
        return 0.2 * jax.random.normal(k, (C, C, 1, 1), jnp.float32)

    def bn(k):           # (gamma, beta, running_mean, running_var)
        kg, kb, km, kv = jax.random.split(k, 4)
        gamma = 1.0 + 0.1 * jax.random.normal(kg, (C,), jnp.float32)
        beta = 0.1 * jax.random.normal(kb, (C,), jnp.float32)
        mean = 0.1 * jax.random.normal(km, (C,), jnp.float32)
        var = 0.5 + jnp.abs(jax.random.normal(kv, (C,), jnp.float32))
        return gamma, beta, mean, var

    return dict(
        dw1=dw(ks[0], 3, 1), dw2=dw(ks[1], 1, 3), bn1=bn(ks[2]),
        pw1=pw(ks[3]), bn2=bn(ks[4]),
        dw3=dw(ks[5], 3, 1), dw4=dw(ks[6], 1, 3), bn3=bn(ks[7]),
        pw2=pw(ks[8]), bn4=bn(ks[9]),
    )


def to_kernel_params(tp, W, dilation):
    """Fold the BatchNorms into the 1x1 convs (block-diagonal MXU weight +
    bias), tile depthwise taps to the (W*C,)-lane layout and fold the W-edge
    "same"-padding masks into taps 0/2 of the (1,3) convs."""
    C = tp["pw1"].shape[0]
    WC = W * C

    def fold(p):         # inference-mode BN -> per-channel scale / shift
        gamma, beta, mean, var = p
        s = gamma / jnp.sqrt(var + EPS)
        return s, beta - mean * s

    def dw_tile(w_torch, mask_pixels=None):
        # (C,1,3,1) or (C,1,1,3) -> (3, C) -> tiled (3, W*C).  For the (1,3)
        # convs, zero the first d*C lanes of tap 0 (reads pixel w-d) and the
        # last d*C lanes of tap 2 (reads pixel w+d) so the kernel needs no
        # runtime edge masks on the lane axis.
        w = w_torch.reshape(C, 3).T
        tiled = jnp.tile(w, (1, W))
        if mask_pixels is not None:
            s = mask_pixels * C
            lane = jnp.arange(WC)
            m0 = (lane >= s).astype(tiled.dtype)
            m2 = (lane < WC - s).astype(tiled.dtype)
            tiled = jnp.stack([tiled[0] * m0, tiled[1], tiled[2] * m2])
        return tiled

    def pw_fold(w_torch, bn_pre, bn_post):
        w1 = w_torch[:, :, 0, 0].T                      # (Cin, Cout)
        s_pre, t_pre = fold(bn_pre)
        s_post, t_post = fold(bn_post)
        wp = s_pre[:, None] * w1 * s_post[None, :]      # BN-folded 1x1 weight
        bias = (t_pre @ w1) * s_post + t_post           # folded bias, (C,)
        # Block-diagonal (WC, WC): W copies of wp on the diagonal so the
        # lane-dense (H, WC) activation hits the MXU in a single matmul
        # (lane index = w*C + c on both sides).
        w_blk = jnp.kron(jnp.eye(W, dtype=wp.dtype), wp)
        return w_blk, jnp.tile(bias[None, :], (1, W))

    c1, b1 = pw_fold(tp["pw1"], tp["bn1"], tp["bn2"])
    c2, b2 = pw_fold(tp["pw2"], tp["bn3"], tp["bn4"])
    return (dw_tile(tp["dw1"]), dw_tile(tp["dw2"], dilation), c1, b1,
            dw_tile(tp["dw3"]), dw_tile(tp["dw4"], 1), c2, b2)


# ----------------------------------------------------------------------------
# Pure-JAX (lax.conv) reference, NCHW, matching PyTorch semantics exactly
# (BN applied separately, unfolded).
# ----------------------------------------------------------------------------
def ref_forward(x, tp, dilation):
    C = x.shape[1]

    def conv(v, w, padding, rhs_dilation, groups):
        return jax.lax.conv_general_dilated(
            v, w, window_strides=(1, 1), padding=padding,
            rhs_dilation=rhs_dilation,
            dimension_numbers=("NCHW", "OIHW", "NCHW"),
            feature_group_count=groups)

    def bn(v, p):
        gamma, beta, mean, var = p
        scale = gamma / jnp.sqrt(var + EPS)
        shift = beta - mean * scale
        return v * scale[None, :, None, None] + shift[None, :, None, None]

    d = dilation
    y = conv(x, tp["dw1"], ((d, d), (0, 0)), (d, 1), C)
    y = jnp.maximum(y, 0.0)
    y = conv(y, tp["dw2"], ((0, 0), (d, d)), (1, d), C)
    y = bn(y, tp["bn1"])
    y = conv(y, tp["pw1"], ((0, 0), (0, 0)), (1, 1), 1)
    y = bn(y, tp["bn2"])
    y = jnp.maximum(y, 0.0)
    y = conv(y, tp["dw3"], ((1, 1), (0, 0)), (1, 1), C)
    y = jnp.maximum(y, 0.0)
    y = conv(y, tp["dw4"], ((0, 0), (1, 1)), (1, 1), C)
    y = bn(y, tp["bn3"])
    y = conv(y, tp["pw2"], ((0, 0), (0, 0)), (1, 1), 1)
    y = bn(y, tp["bn4"])
    return jnp.maximum(y + x, 0.0)


if __name__ == "__main__":
    B, C, H, W = 2, 8, 16, 16          # W * C = 128 -> one full lane register
    dilation = 2

    key = jax.random.PRNGKey(0)
    kx, kp = jax.random.split(key)
    x_nhwc = jax.random.normal(kx, (B, H, W, C), jnp.float32)  # NHWC input

    tparams = init_torch_params(kp, C)
    kparams = to_kernel_params(tparams, W, dilation)

    out = jax.block_until_ready(crd_ds_block(x_nhwc, kparams, dilation))

    # Reference check in PyTorch's NCHW layout (transposes only on the
    # reference path, not around the kernel).
    x_nchw = jnp.transpose(x_nhwc, (0, 3, 1, 2))
    ref = jnp.transpose(ref_forward(x_nchw, tparams, dilation), (0, 2, 3, 1))
    ref = jax.block_until_ready(ref)

    assert out.shape == (B, H, W, C)
    np.testing.assert_allclose(np.asarray(out), np.asarray(ref),
                               rtol=1e-4, atol=1e-4)
    print("KERNEL_OK")
</pallas_src>

<mosaic_0001>
module attributes {stable_mosaic.version = 11 : i64} {
  func.func @crd_ds_block_kernel(%arg0: i32, %arg1: memref<1x16x128xf32, #tpu.memory_space<vmem>>, %arg2: memref<3x128xf32, #tpu.memory_space<vmem>>, %arg3: memref<3x128xf32, #tpu.memory_space<vmem>>, %arg4: memref<128x128xf32, #tpu.memory_space<vmem>>, %arg5: memref<1x128xf32, #tpu.memory_space<vmem>>, %arg6: memref<3x128xf32, #tpu.memory_space<vmem>>, %arg7: memref<3x128xf32, #tpu.memory_space<vmem>>, %arg8: memref<128x128xf32, #tpu.memory_space<vmem>>, %arg9: memref<1x128xf32, #tpu.memory_space<vmem>>, %arg10: memref<1x16x128xf32, #tpu.memory_space<vmem>>) attributes {dimension_semantics = [#tpu.dimension_semantics<parallel>], iteration_bounds = array<i64: 2>, scalar_prefetch = 0 : i64, scratch_operands = 0 : i64, tpu.core_type = #tpu.core_type<tc>, window_params = [{transform_indices = @transform_0, window_bounds = array<i64: 1, 16, 128>}, {pipeline_mode = #tpu.pipeline_mode<synchronous>, transform_indices = @transform_1, window_bounds = array<i64: 3, 128>}, {pipeline_mode = #tpu.pipeline_mode<synchronous>, transform_indices = @transform_2, window_bounds = array<i64: 3, 128>}, {pipeline_mode = #tpu.pipeline_mode<synchronous>, transform_indices = @transform_3, window_bounds = array<i64: 128, 128>}, {pipeline_mode = #tpu.pipeline_mode<synchronous>, transform_indices = @transform_4, window_bounds = array<i64: 1, 128>}, {pipeline_mode = #tpu.pipeline_mode<synchronous>, transform_indices = @transform_5, window_bounds = array<i64: 3, 128>}, {pipeline_mode = #tpu.pipeline_mode<synchronous>, transform_indices = @transform_6, window_bounds = array<i64: 3, 128>}, {pipeline_mode = #tpu.pipeline_mode<synchronous>, transform_indices = @transform_7, window_bounds = array<i64: 128, 128>}, {pipeline_mode = #tpu.pipeline_mode<synchronous>, transform_indices = @transform_8, window_bounds = array<i64: 1, 128>}, {transform_indices = @transform_9, window_bounds = array<i64: 1, 16, 128>}]} {
    %c0 = arith.constant 0 : index
    %c0_0 = arith.constant 0 : index
    %c0_1 = arith.constant 0 : index
    %0 = vector.load %arg1[%c0, %c0_0, %c0_1] : memref<1x16x128xf32, #tpu.memory_space<vmem>>, vector<1x16x128xf32>
    %1 = vector.shape_cast %0 : vector<1x16x128xf32> to vector<16x128xf32>
    %2 = tpu.iota {dimensions = array<i32: 0>} : vector<16x1xi32>
    %c1_i32 = arith.constant 1 : i32
    %3 = vector.broadcast %c1_i32 : i32 to vector<16x1xi32>
    %4 = arith.cmpi sge, %2, %3 : vector<16x1xi32>
    %5 = arith.extui %4 : vector<16x1xi1> to vector<16x1xi32>
    %6 = arith.sitofp %5 : vector<16x1xi32> to vector<16x1xf32>
    %c15_i32 = arith.constant 15 : i32
    %7 = vector.broadcast %c15_i32 : i32 to vector<16x1xi32>
    %8 = arith.cmpi slt, %2, %7 : vector<16x1xi32>
    %9 = arith.extui %8 : vector<16x1xi1> to vector<16x1xi32>
    %10 = arith.sitofp %9 : vector<16x1xi32> to vector<16x1xf32>
    %c2_i32 = arith.constant 2 : i32
    %11 = vector.broadcast %c2_i32 : i32 to vector<16x1xi32>
    %12 = arith.cmpi sge, %2, %11 : vector<16x1xi32>
    %13 = arith.extui %12 : vector<16x1xi1> to vector<16x1xi32>
    %14 = arith.sitofp %13 : vector<16x1xi32> to vector<16x1xf32>
    %c14_i32 = arith.constant 14 : i32
    %15 = vector.broadcast %c14_i32 : i32 to vector<16x1xi32>
    %16 = arith.cmpi slt, %2, %15 : vector<16x1xi32>
    %17 = arith.extui %16 : vector<16x1xi1> to vector<16x1xi32>
    %18 = arith.sitofp %17 : vector<16x1xi32> to vector<16x1xf32>
    %c2_i32_2 = arith.constant 2 : i32
    %19 = tpu.dynamic_rotate %1 by %c2_i32_2 dim 0 : vector<16x128xf32>, i32 -> vector<16x128xf32>
    %20 = vector.broadcast %14 : vector<16x1xf32> to vector<16x128xf32>
    %21 = arith.mulf %19, %20 : vector<16x128xf32>
    %c14_i32_3 = arith.constant 14 : i32
    %22 = tpu.dynamic_rotate %1 by %c14_i32_3 dim 0 : vector<16x128xf32>, i32 -> vector<16x128xf32>
    %23 = vector.broadcast %18 : vector<16x1xf32> to vector<16x128xf32>
    %24 = arith.mulf %22, %23 : vector<16x128xf32>
    %c0_4 = arith.constant 0 : index
    %c0_5 = arith.constant 0 : index
    %25 = vector.load %arg2[%c0_4, %c0_5] : memref<3x128xf32, #tpu.memory_space<vmem>>, vector<1x128xf32>
    %26 = vector.broadcast %25 : vector<1x128xf32> to vector<16x128xf32>
    %27 = arith.mulf %26, %21 : vector<16x128xf32>
    %c1 = arith.constant 1 : index
    %c0_6 = arith.constant 0 : index
    %28 = vector.load %arg2[%c1, %c0_6] : memref<3x128xf32, #tpu.memory_space<vmem>>, vector<1x128xf32>
    %29 = vector.broadcast %28 : vector<1x128xf32> to vector<16x128xf32>
    %30 = arith.mulf %29, %1 : vector<16x128xf32>
    %31 = arith.addf %27, %30 : vector<16x128xf32>
    %c2 = arith.constant 2 : index
    %c0_7 = arith.constant 0 : index
    %32 = vector.load %arg2[%c2, %c0_7] : memref<3x128xf32, #tpu.memory_space<vmem>>, vector<1x128xf32>
    %33 = vector.broadcast %32 : vector<1x128xf32> to vector<16x128xf32>
    %34 = arith.mulf %33, %24 : vector<16x128xf32>
    %35 = arith.addf %31, %34 : vector<16x128xf32>
    %cst = arith.constant 0.000000e+00 : f32
    %36 = vector.broadcast %cst : f32 to vector<16x128xf32>
    %37 = arith.maximumf %35, %36 : vector<16x128xf32>
    %c16_i32 = arith.constant 16 : i32
    %38 = tpu.dynamic_rotate %37 by %c16_i32 dim 1 : vector<16x128xf32>, i32 -> vector<16x128xf32>
    %c112_i32 = arith.constant 112 : i32
    %39 = tpu.dynamic_rotate %37 by %c112_i32 dim 1 : vector<16x128xf32>, i32 -> vector<16x128xf32>
    %c0_8 = arith.constant 0 : index
    %c0_9 = arith.constant 0 : index
    %40 = vector.load %arg3[%c0_8, %c0_9] : memref<3x128xf32, #tpu.memory_space<vmem>>, vector<1x128xf32>
    %41 = vector.broadcast %40 : vector<1x128xf32> to vector<16x128xf32>
    %42 = arith.mulf %41, %38 : vector<16x128xf32>
    %c1_10 = arith.constant 1 : index
    %c0_11 = arith.constant 0 : index
    %43 = vector.load %arg3[%c1_10, %c0_11] : memref<3x128xf32, #tpu.memory_space<vmem>>, vector<1x128xf32>
    %44 = vector.broadcast %43 : vector<1x128xf32> to vector<16x128xf32>
    %45 = arith.mulf %44, %37 : vector<16x128xf32>
    %46 = arith.addf %42, %45 : vector<16x128xf32>
    %c2_12 = arith.constant 2 : index
    %c0_13 = arith.constant 0 : index
    %47 = vector.load %arg3[%c2_12, %c0_13] : memref<3x128xf32, #tpu.memory_space<vmem>>, vector<1x128xf32>
    %48 = vector.broadcast %47 : vector<1x128xf32> to vector<16x128xf32>
    %49 = arith.mulf %48, %39 : vector<16x128xf32>
    %50 = arith.addf %46, %49 : vector<16x128xf32>
    %c0_14 = arith.constant 0 : index
    %c0_15 = arith.constant 0 : index
    %51 = vector.load %arg4[%c0_14, %c0_15] : memref<128x128xf32, #tpu.memory_space<vmem>>, vector<128x128xf32>
    %cst_16 = arith.constant dense<0.000000e+00> : vector<16x128xf32>
    %52 = tpu.matmul %50, %51, %cst_16 {dimension_numbers = #tpu.dot_dimension_numbers<[1], [0], [0], [1], [0, 0, 1, 1], [], []>, precision = #tpu.contract_precision<fp32>} : vector<16x128xf32>, vector<128x128xf32>, vector<16x128xf32> -> vector<16x128xf32>
    %c0_17 = arith.constant 0 : index
    %c0_18 = arith.constant 0 : index
    %53 = vector.load %arg5[%c0_17, %c0_18] : memref<1x128xf32, #tpu.memory_space<vmem>>, vector<1x128xf32>
    %54 = vector.broadcast %53 : vector<1x128xf32> to vector<16x128xf32>
    %55 = arith.addf %52, %54 : vector<16x128xf32>
    %cst_19 = arith.constant 0.000000e+00 : f32
    %56 = vector.broadcast %cst_19 : f32 to vector<16x128xf32>
    %57 = arith.maximumf %55, %56 : vector<16x128xf32>
    %c1_i32_20 = arith.constant 1 : i32
    %58 = tpu.dynamic_rotate %57 by %c1_i32_20 dim 0 : vector<16x128xf32>, i32 -> vector<16x128xf32>
    %59 = vector.broadcast %6 : vector<16x1xf32> to vector<16x128xf32>
    %60 = arith.mulf %58, %59 : vector<16x128xf32>
    %c15_i32_21 = arith.constant 15 : i32
    %61 = tpu.dynamic_rotate %57 by %c15_i32_21 dim 0 : vector<16x128xf32>, i32 -> vector<16x128xf32>
    %62 = vector.broadcast %10 : vector<16x1xf32> to vector<16x128xf32>
    %63 = arith.mulf %61, %62 : vector<16x128xf32>
    %c0_22 = arith.constant 0 : index
    %c0_23 = arith.constant 0 : index
    %64 = vector.load %arg6[%c0_22, %c0_23] : memref<3x128xf32, #tpu.memory_space<vmem>>, vector<1x128xf32>
    %65 = vector.broadcast %64 : vector<1x128xf32> to vector<16x128xf32>
    %66 = arith.mulf %65, %60 : vector<16x128xf32>
    %c1_24 = arith.constant 1 : index
    %c0_25 = arith.constant 0 : index
    %67 = vector.load %arg6[%c1_24, %c0_25] : memref<3x128xf32, #tpu.memory_space<vmem>>, vector<1x128xf32>
    %68 = vector.broadcast %67 : vector<1x128xf32> to vector<16x128xf32>
    %69 = arith.mulf %68, %57 : vector<16x128xf32>
    %70 = arith.addf %66, %69 : vector<16x128xf32>
    %c2_26 = arith.constant 2 : index
    %c0_27 = arith.constant 0 : index
    %71 = vector.load %arg6[%c2_26, %c0_27] : memref<3x128xf32, #tpu.memory_space<vmem>>, vector<1x128xf32>
    %72 = vector.broadcast %71 : vector<1x128xf32> to vector<16x128xf32>
    %73 = arith.mulf %72, %63 : vector<16x128xf32>
    %74 = arith.addf %70, %73 : vector<16x128xf32>
    %cst_28 = arith.constant 0.000000e+00 : f32
    %75 = vector.broadcast %cst_28 : f32 to vector<16x128xf32>
    %76 = arith.maximumf %74, %75 : vector<16x128xf32>
    %c8_i32 = arith.constant 8 : i32
    %77 = tpu.dynamic_rotate %76 by %c8_i32 dim 1 : vector<16x128xf32>, i32 -> vector<16x128xf32>
    %c120_i32 = arith.constant 120 : i32
    %78 = tpu.dynamic_rotate %76 by %c120_i32 dim 1 : vector<16x128xf32>, i32 -> vector<16x128xf32>
    %c0_29 = arith.constant 0 : index
    %c0_30 = arith.constant 0 : index
    %79 = vector.load %arg7[%c0_29, %c0_30] : memref<3x128xf32, #tpu.memory_space<vmem>>, vector<1x128xf32>
    %80 = vector.broadcast %79 : vector<1x128xf32> to vector<16x128xf32>
    %81 = arith.mulf %80, %77 : vector<16x128xf32>
    %c1_31 = arith.constant 1 : index
    %c0_32 = arith.constant 0 : index
    %82 = vector.load %arg7[%c1_31, %c0_32] : memref<3x128xf32, #tpu.memory_space<vmem>>, vector<1x128xf32>
    %83 = vector.broadcast %82 : vector<1x128xf32> to vector<16x128xf32>
    %84 = arith.mulf %83, %76 : vector<16x128xf32>
    %85 = arith.addf %81, %84 : vector<16x128xf32>
    %c2_33 = arith.constant 2 : index
    %c0_34 = arith.constant 0 : index
    %86 = vector.load %arg7[%c2_33, %c0_34] : memref<3x128xf32, #tpu.memory_space<vmem>>, vector<1x128xf32>
    %87 = vector.broadcast %86 : vector<1x128xf32> to vector<16x128xf32>
    %88 = arith.mulf %87, %78 : vector<16x128xf32>
    %89 = arith.addf %85, %88 : vector<16x128xf32>
    %c0_35 = arith.constant 0 : index
    %c0_36 = arith.constant 0 : index
    %90 = vector.load %arg8[%c0_35, %c0_36] : memref<128x128xf32, #tpu.memory_space<vmem>>, vector<128x128xf32>
    %cst_37 = arith.constant dense<0.000000e+00> : vector<16x128xf32>
    %91 = tpu.matmul %89, %90, %cst_37 {dimension_numbers = #tpu.dot_dimension_numbers<[1], [0], [0], [1], [0, 0, 1, 1], [], []>, precision = #tpu.contract_precision<fp32>} : vector<16x128xf32>, vector<128x128xf32>, vector<16x128xf32> -> vector<16x128xf32>
    %c0_38 = arith.constant 0 : index
    %c0_39 = arith.constant 0 : index
    %92 = vector.load %arg9[%c0_38, %c0_39] : memref<1x128xf32, #tpu.memory_space<vmem>>, vector<1x128xf32>
    %93 = vector.broadcast %92 : vector<1x128xf32> to vector<16x128xf32>
    %94 = arith.addf %91, %93 : vector<16x128xf32>
    %95 = arith.addf %94, %1 : vector<16x128xf32>
    %cst_40 = arith.constant 0.000000e+00 : f32
    %96 = vector.broadcast %cst_40 : f32 to vector<16x128xf32>
    %97 = arith.maximumf %95, %96 : vector<16x128xf32>
    %c0_41 = arith.constant 0 : index
    %c0_42 = arith.constant 0 : index
    %c0_43 = arith.constant 0 : index
    %98 = vector.load %arg10[%c0_41, %c0_42, %c0_43] : memref<1x16x128xf32, #tpu.memory_space<vmem>>, vector<1x16x128xf32>
    %99 = vector.shape_cast %98 : vector<1x16x128xf32> to vector<16x128xf32>
    %100 = vector.shape_cast %97 : vector<16x128xf32> to vector<1x16x128xf32>
    tpu.vector_store %arg10[%c0_41, %c0_42, %c0_43], %100 {strides = array<i32>} : memref<1x16x128xf32, #tpu.memory_space<vmem>>, vector<1x16x128xf32>,
    return
  }
  func.func @transform_0(%arg0: i32) -> (i32, i32, i32) {
    %c0_i32 = arith.constant 0 : i32
    %c0_i32_0 = arith.constant 0 : i32
    %c0_i32_1 = arith.constant 0 : i32
    return %arg0, %c0_i32, %c0_i32_0 : i32, i32, i32
  }
  func.func @transform_1(%arg0: i32) -> (i32, i32) {
    %c0_i32 = arith.constant 0 : i32
    %c0_i32_0 = arith.constant 0 : i32
    %c0_i32_1 = arith.constant 0 : i32
    return %c0_i32, %c0_i32_0 : i32, i32
  }
  func.func @transform_2(%arg0: i32) -> (i32, i32) {
    %c0_i32 = arith.constant 0 : i32
    %c0_i32_0 = arith.constant 0 : i32
    %c0_i32_1 = arith.constant 0 : i32
    return %c0_i32, %c0_i32_0 : i32, i32
  }
  func.func @transform_3(%arg0: i32) -> (i32, i32) {
    %c0_i32 = arith.constant 0 : i32
    %c0_i32_0 = arith.constant 0 : i32
    %c0_i32_1 = arith.constant 0 : i32
    return %c0_i32, %c0_i32_0 : i32, i32
  }
  func.func @transform_4(%arg0: i32) -> (i32, i32) {
    %c0_i32 = arith.constant 0 : i32
    %c0_i32_0 = arith.constant 0 : i32
    %c0_i32_1 = arith.constant 0 : i32
    return %c0_i32, %c0_i32_0 : i32, i32
  }
  func.func @transform_5(%arg0: i32) -> (i32, i32) {
    %c0_i32 = arith.constant 0 : i32
    %c0_i32_0 = arith.constant 0 : i32
    %c0_i32_1 = arith.constant 0 : i32
    return %c0_i32, %c0_i32_0 : i32, i32
  }
  func.func @transform_6(%arg0: i32) -> (i32, i32) {
    %c0_i32 = arith.constant 0 : i32
    %c0_i32_0 = arith.constant 0 : i32
    %c0_i32_1 = arith.constant 0 : i32
    return %c0_i32, %c0_i32_0 : i32, i32
  }
  func.func @transform_7(%arg0: i32) -> (i32, i32) {
    %c0_i32 = arith.constant 0 : i32
    %c0_i32_0 = arith.constant 0 : i32
    %c0_i32_1 = arith.constant 0 : i32
    return %c0_i32, %c0_i32_0 : i32, i32
  }
  func.func @transform_8(%arg0: i32) -> (i32, i32) {
    %c0_i32 = arith.constant 0 : i32
    %c0_i32_0 = arith.constant 0 : i32
    %c0_i32_1 = arith.constant 0 : i32
    return %c0_i32, %c0_i32_0 : i32, i32
  }
  func.func @transform_9(%arg0: i32) -> (i32, i32, i32) {
    %c0_i32 = arith.constant 0 : i32
    %c0_i32_0 = arith.constant 0 : i32
    %c0_i32_1 = arith.constant 0 : i32
    return %arg0, %c0_i32, %c0_i32_0 : i32, i32, i32
  }
}

</mosaic_0001>

<llo_original>
// kernel: tpu_custom_call.1
$region0: #{tpu_custom_call.1}
  #allocation0 [shape = 'u32[]', space=smem, size = 0x4, offset = 0x4, fixed_abs, tag = 'smem constant byte address 0x4 - core index']
  #allocation1 [shape = 'u32[144,128]{1,0:T(1,128)}', space=vmem, size = 0x12000, scoped, tag = 'internal scratch']
  %s0 = inlined_call_operand.hbm [shape: f32[2,16,128], index: 0, kind: input, shape index: {}]
  %s1 = inlined_call_operand.hbm [shape: f32[3,128], index: 1, kind: input, shape index: {}]
  %s2 = inlined_call_operand.vmem [shape: f32[3,128], index: 2, kind: input, shape index: {}]
  %s3 = inlined_call_operand.hbm [shape: f32[128,128], index: 3, kind: input, shape index: {}]
  %s4 = inlined_call_operand.vmem [shape: f32[1,128], index: 4, kind: input, shape index: {}]
  %s5 = inlined_call_operand.vmem [shape: f32[3,128], index: 5, kind: input, shape index: {}]
  %s6 = inlined_call_operand.vmem [shape: f32[3,128], index: 6, kind: input, shape index: {}]
  %s7 = inlined_call_operand.hbm [shape: f32[128,128], index: 7, kind: input, shape index: {}]
  %s8 = inlined_call_operand.vmem [shape: f32[1,128], index: 8, kind: input, shape index: {}]
  %s9 = inlined_call_operand.hbm [shape: f32[2,16,128], index: 9, kind: output, shape index: {}]
  %s10 = sld [smem:[#allocation0]]
  $region85: #{tpu_custom_call.1} parent=0
    _
  %s12 = ssub.s32 1, %s10
  %s13 = scalar_select 0, %s12, %s10
  $region1: #{tpu_custom_call.1} parent=0
    #allocation2 [shape = 'u8[16384]{0}', space=vmem, size = 0x4000, scoped, tag = 'input window, operand 0']
    #allocation3 [shape = 's32[2]{0}', space=sflag, size = 0x8, scoped, tag = 'scoped memory for tpu_custom_call.1']
    #allocation4 [shape = 's32[2]{0}', space=sflag, size = 0x8, scoped, tag = 'scoped memory for tpu_custom_call.1']
    #allocation5 [shape = 'u8[2048]{0}', space=vmem, size = 0x800, scoped, tag = 'input window, operand 1, single buffered']
    #allocation6 [shape = 's32[1]{0}', space=sflag, size = 0x4, scoped, tag = 'scoped memory for tpu_custom_call.1']
    #allocation7 [shape = 'u8[65536]{0}', space=vmem, size = 0x10000, scoped, tag = 'input window, operand 3, single buffered']
    #allocation8 [shape = 'u8[65536]{0}', space=vmem, size = 0x10000, scoped, tag = 'input window, operand 7, single buffered']
    #allocation9 [shape = 's32[1]{0}', space=sflag, size = 0x4, scoped, tag = 'scoped memory for tpu_custom_call.1']
    #allocation10 [shape = 'u8[16384]{0}', space=vmem, size = 0x4000, scoped, tag = 'output window, operand 0']
    %14 = vsyncpa [#allocation3], 0
    %s15 = scalar_lea.sflag [#allocation3], 1
    %16 = vsyncpa %s15, 0
    %17 = vsyncpa [#allocation6], 0
    %18 = vsyncpa [#allocation9], 0
    %19 = vsyncpa [#allocation4], 0
    %s20 = scalar_lea.sflag [#allocation4], 1
    %21 = vsyncpa %s20, 0
    loop: start=0, step=1, limit=4
    $region2: #{tpu_custom_call.1} parent=1 // loop_pre_header
      _
    $region3: #{tpu_custom_call.1} parent=1 // loop_header
      %s23 = sphi 0, %s27
      %p24 = scmp.ge.s32.totalorder %s23, 4
      %s33 = sphi 0, %s35
      %s36 = sphi 0, %s33
      %s37 = sphi 0, %s36
      %s53 = sphi 0, %s37
      %s57 = sphi 0, %s57
      %s59 = sphi 0, %s57
      %s60 = sphi 0, %s59
      %s74 = sphi 0, %s60
      %s78 = sphi 0, %s78
      %s80 = sphi 0, %s78
      %s81 = sphi 0, %s80
      %s95 = sphi 0, %s81
      %s99 = sphi 0, %s99
      %s101 = sphi 0, %s99
      %s102 = sphi 0, %s101
      %s116 = sphi 0, %s102
      %s120 = sphi 0, %s120
      %s122 = sphi 0, %s120
      %s123 = sphi 0, %s122
      %s137 = sphi 0, %s123
      %s141 = sphi 0, %s141
      %s143 = sphi 0, %s141
      %s144 = sphi 0, %s143
      %s158 = sphi 0, %s144
      %s162 = sphi 0, %s162
      %s164 = sphi 0, %s162
      %s165 = sphi 0, %s164
      %s179 = sphi 0, %s165
      %s183 = sphi 0, %s183
      %s185 = sphi 0, %s183
      %s186 = sphi 0, %s185
      %s200 = sphi 0, %s186
      %s204 = sphi 0, %s204
      %s206 = sphi 0, %s204
      %s207 = sphi 0, %s206
      %s221 = sphi 0, %s207
      %s227 = sphi 0, %s229
      %s230 = sphi 0, %s227
      %s231 = sphi 0, %s230
      %s247 = sphi 0, %s231
    $region4: #{tpu_custom_call.1} parent=1 // loop_header_branch
      %26 = sbr.rel (%p24) target = $region8
    $region5: #{tpu_custom_call.1} parent=1 // loop_body
      %s28 = ssub.s32 %s23, 1
      %s29 = ssub.s32 %s23, 2
      %s30 = sadd.s32 %s23, 1
      %s31 = ssub.s32 %s23, %s30
      %p32 = scmp.eq.s32.totalorder %s31, 0
      %s34 = sadd.s32 %s33, 1
      %s35 = scalar_select %p32, %s33, %s34
      %p38 = pneg %p32
      %p39 = scmp.eq.s32.totalorder %s23, 1
      %p40 = por %p38, %p39
      %p41 = scmp.ne.s32.totalorder %s33, %s36
      %p42 = scmp.eq.s32.totalorder %s23, 0
      %p43 = por %p41, %p42
      %p44 = scmp.ne.s32.totalorder %s33, %s36
      %p45 = scmp.eq.s32.totalorder %s28, 1
      %p46 = por %p44, %p45
      %p47 = scmp.ne.s32.totalorder %s36, %s37
      %p48 = scmp.eq.s32.totalorder %s28, 0
      %p49 = por %p47, %p48
      %p50 = scmp.ne.s32.totalorder %s36, %s37
      %p51 = scmp.eq.s32.totalorder %s29, 1
      %p52 = por %p50, %p51
      %p54 = scmp.ne.s32.totalorder %s37, %s53
      %p55 = scmp.eq.s32.totalorder %s29, 0
      %p56 = por %p54, %p55
      %s58 = sadd.s32 %s57, 1
      %p61 = scmp.eq.s32.totalorder %s23, 1
      %p62 = scmp.ne.s32.totalorder %s57, %s59
      %p63 = scmp.eq.s32.totalorder %s23, 0
      %p64 = por %p62, %p63
      %p65 = scmp.ne.s32.totalorder %s57, %s59
      %p66 = scmp.eq.s32.totalorder %s28, 1
      %p67 = por %p65, %p66
      %p68 = scmp.ne.s32.totalorder %s59, %s60
      %p69 = scmp.eq.s32.totalorder %s28, 0
      %p70 = por %p68, %p69
      %p71 = scmp.ne.s32.totalorder %s59, %s60
      %p72 = scmp.eq.s32.totalorder %s29, 1
      %p73 = por %p71, %p72
      %p75 = scmp.ne.s32.totalorder %s60, %s74
      %p76 = scmp.eq.s32.totalorder %s29, 0
      %p77 = por %p75, %p76
      %s79 = sadd.s32 %s78, 1
      %p82 = scmp.eq.s32.totalorder %s23, 1
      %p83 = scmp.ne.s32.totalorder %s78, %s80
      %p84 = scmp.eq.s32.totalorder %s23, 0
      %p85 = por %p83, %p84
      %p86 = scmp.ne.s32.totalorder %s78, %s80
      %p87 = scmp.eq.s32.totalorder %s28, 1
      %p88 = por %p86, %p87
      %p89 = scmp.ne.s32.totalorder %s80, %s81
      %p90 = scmp.eq.s32.totalorder %s28, 0
      %p91 = por %p89, %p90
      %p92 = scmp.ne.s32.totalorder %s80, %s81
      %p93 = scmp.eq.s32.totalorder %s29, 1
      %p94 = por %p92, %p93
      %p96 = scmp.ne.s32.totalorder %s81, %s95
      %p97 = scmp.eq.s32.totalorder %s29, 0
      %p98 = por %p96, %p97
      %s100 = sadd.s32 %s99, 1
      %p103 = scmp.eq.s32.totalorder %s23, 1
      %p104 = scmp.ne.s32.totalorder %s99, %s101
      %p105 = scmp.eq.s32.totalorder %s23, 0
      %p106 = por %p104, %p105
      %p107 = scmp.ne.s32.totalorder %s99, %s101
      %p108 = scmp.eq.s32.totalorder %s28, 1
      %p109 = por %p107, %p108
      %p110 = scmp.ne.s32.totalorder %s101, %s102
      %p111 = scmp.eq.s32.totalorder %s28, 0
      %p112 = por %p110, %p111
      %p113 = scmp.ne.s32.totalorder %s101, %s102
      %p114 = scmp.eq.s32.totalorder %s29, 1
      %p115 = por %p113, %p114
      %p117 = scmp.ne.s32.totalorder %s102, %s116
      %p118 = scmp.eq.s32.totalorder %s29, 0
      %p119 = por %p117, %p118
      %s121 = sadd.s32 %s120, 1
      %p124 = scmp.eq.s32.totalorder %s23, 1
      %p125 = scmp.ne.s32.totalorder %s120, %s122
      %p126 = scmp.eq.s32.totalorder %s23, 0
      %p127 = por %p125, %p126
      %p128 = scmp.ne.s32.totalorder %s120, %s122
      %p129 = scmp.eq.s32.totalorder %s28, 1
      %p130 = por %p128, %p129
      %p131 = scmp.ne.s32.totalorder %s122, %s123
      %p132 = scmp.eq.s32.totalorder %s28, 0
      %p133 = por %p131, %p132
      %p134 = scmp.ne.s32.totalorder %s122, %s123
      %p135 = scmp.eq.s32.totalorder %s29, 1
      %p136 = por %p134, %p135
      %p138 = scmp.ne.s32.totalorder %s123, %s137
      %p139 = scmp.eq.s32.totalorder %s29, 0
      %p140 = por %p138, %p139
      %s142 = sadd.s32 %s141, 1
      %p145 = scmp.eq.s32.totalorder %s23, 1
      %p146 = scmp.ne.s32.totalorder %s141, %s143
      %p147 = scmp.eq.s32.totalorder %s23, 0
      %p148 = por %p146, %p147
      %p149 = scmp.ne.s32.totalorder %s141, %s143
      %p150 = scmp.eq.s32.totalorder %s28, 1
      %p151 = por %p149, %p150
      %p152 = scmp.ne.s32.totalorder %s143, %s144
      %p153 = scmp.eq.s32.totalorder %s28, 0
      %p154 = por %p152, %p153
      %p155 = scmp.ne.s32.totalorder %s143, %s144
      %p156 = scmp.eq.s32.totalorder %s29, 1
      %p157 = por %p155, %p156
      %p159 = scmp.ne.s32.totalorder %s144, %s158
      %p160 = scmp.eq.s32.totalorder %s29, 0
      %p161 = por %p159, %p160
      %s163 = sadd.s32 %s162, 1
      %p166 = scmp.eq.s32.totalorder %s23, 1
      %p167 = scmp.ne.s32.totalorder %s162, %s164
      %p168 = scmp.eq.s32.totalorder %s23, 0
      %p169 = por %p167, %p168
      %p170 = scmp.ne.s32.totalorder %s162, %s164
      %p171 = scmp.eq.s32.totalorder %s28, 1
      %p172 = por %p170, %p171
      %p173 = scmp.ne.s32.totalorder %s164, %s165
      %p174 = scmp.eq.s32.totalorder %s28, 0
      %p175 = por %p173, %p174
      %p176 = scmp.ne.s32.totalorder %s164, %s165
      %p177 = scmp.eq.s32.totalorder %s29, 1
      %p178 = por %p176, %p177
      %p180 = scmp.ne.s32.totalorder %s165, %s179
      %p181 = scmp.eq.s32.totalorder %s29, 0
      %p182 = por %p180, %p181
      %s184 = sadd.s32 %s183, 1
      %p187 = scmp.eq.s32.totalorder %s23, 1
      %p188 = scmp.ne.s32.totalorder %s183, %s185
      %p189 = scmp.eq.s32.totalorder %s23, 0
      %p190 = por %p188, %p189
      %p191 = scmp.ne.s32.totalorder %s183, %s185
      %p192 = scmp.eq.s32.totalorder %s28, 1
      %p193 = por %p191, %p192
      %p194 = scmp.ne.s32.totalorder %s185, %s186
      %p195 = scmp.eq.s32.totalorder %s28, 0
      %p196 = por %p194, %p195
      %p197 = scmp.ne.s32.totalorder %s185, %s186
      %p198 = scmp.eq.s32.totalorder %s29, 1
      %p199 = por %p197, %p198
      %p201 = scmp.ne.s32.totalorder %s186, %s200
      %p202 = scmp.eq.s32.totalorder %s29, 0
      %p203 = por %p201, %p202
      %s205 = sadd.s32 %s204, 1
      %p208 = scmp.eq.s32.totalorder %s23, 1
      %p209 = scmp.ne.s32.totalorder %s204, %s206
      %p210 = scmp.eq.s32.totalorder %s23, 0
      %p211 = por %p209, %p210
      %p212 = scmp.ne.s32.totalorder %s204, %s206
      %p213 = scmp.eq.s32.totalorder %s28, 1
      %p214 = por %p212, %p213
      %p215 = scmp.ne.s32.totalorder %s206, %s207
      %p216 = scmp.eq.s32.totalorder %s28, 0
      %p217 = por %p215, %p216
      %p218 = scmp.ne.s32.totalorder %s206, %s207
      %p219 = scmp.eq.s32.totalorder %s29, 1
      %p220 = por %p218, %p219
      %p222 = scmp.ne.s32.totalorder %s207, %s221
      %p223 = scmp.eq.s32.totalorder %s29, 0
      %p224 = por %p222, %p223
      %s225 = ssub.s32 %s23, %s30
      %p226 = scmp.eq.s32.totalorder %s225, 0
      %s228 = sadd.s32 %s227, 1
      %s229 = scalar_select %p226, %s227, %s228
      %p232 = pneg %p226
      %p233 = scmp.eq.s32.totalorder %s23, 1
      %p234 = por %p232, %p233
      %p235 = scmp.ne.s32.totalorder %s227, %s230
      %p236 = scmp.eq.s32.totalorder %s23, 0
      %p237 = por %p235, %p236
      %p238 = scmp.ne.s32.totalorder %s227, %s230
      %p239 = scmp.eq.s32.totalorder %s28, 1
      %p240 = por %p238, %p239
      %p241 = scmp.ne.s32.totalorder %s230, %s231
      %p242 = scmp.eq.s32.totalorder %s28, 0
      %p243 = por %p241, %p242
      %p244 = scmp.ne.s32.totalorder %s230, %s231
      %p245 = scmp.eq.s32.totalorder %s29, 1
      %p246 = por %p244, %p245
      %p248 = scmp.ne.s32.totalorder %s231, %s247
      %p249 = scmp.eq.s32.totalorder %s29, 0
      %p250 = por %p248, %p249
      %p251 = scmp.le.s32.totalorder 1, %s23
      %p252 = scmp.lt.s32.totalorder %s23, 3
      %p253 = pnand %p251, %p252
      %p254 = pneg %p253
      // Predicated region
      $region9: #{tpu_custom_call.1} parent=5 // pred_check
        _
      $region10: #{tpu_custom_call.1} parent=5 // pred_check_branch
        %256 = sbr.rel (%p253) target = $region12
      $region11: #{tpu_custom_call.1} parent=5 // pred_region
        %s257 = ssub.s32 %s23, 1
        // Predicated region
        $region13: #{tpu_custom_call.1} parent=11 // pred_check
          %p258 = pneg %p70
        $region14: #{tpu_custom_call.1} parent=11 // pred_check_branch
          %260 = sbr.rel (%p258) target = $region16
        $region15: #{tpu_custom_call.1} parent=11 // pred_region
          %s262 = ssub.s32 64, 64
          %263 = vsyncadd [#allocation6], %s262
          %s265 = sshll.u32 [#allocation5], 4
          %s266 = int_to_ptr.vmem [resolvable:$true] %s265
          %268 = dma.hbm_to_vmem [thread:$0]  %s1, 64, %s266, [#allocation6]
        $region16: #{tpu_custom_call.1} parent=11 // pred_fallthru
          _
        // Predicated region
        $region17: #{tpu_custom_call.1} parent=11 // pred_check
          %p269 = pneg %p91
        $region18: #{tpu_custom_call.1} parent=11 // pred_check_branch
          %271 = sbr.rel (%p269) target = $region20
        $region19: #{tpu_custom_call.1} parent=11 // pred_region
          _
        $region20: #{tpu_custom_call.1} parent=11 // pred_fallthru
          _
        // Predicated region
        $region21: #{tpu_custom_call.1} parent=11 // pred_check
          %p272 = pneg %p112
        $region22: #{tpu_custom_call.1} parent=11 // pred_check_branch
          %274 = sbr.rel (%p272) target = $region24
        $region23: #{tpu_custom_call.1} parent=11 // pred_region
          %s276 = ssub.s32 2048, 2048
          %277 = vsyncadd [#allocation6], %s276
          %s278 = sshll.u32 [#allocation7], 4
          %s279 = int_to_ptr.vmem [resolvable:$true] %s278
          %284 = dma.hbm_to_vmem [thread:$0]  %s3, 2048, %s279, [#allocation6], 128, 128, 8
        $region24: #{tpu_custom_call.1} parent=11 // pred_fallthru
          _
        // Predicated region
        $region25: #{tpu_custom_call.1} parent=11 // pred_check
          %p285 = pneg %p133
        $region26: #{tpu_custom_call.1} parent=11 // pred_check_branch
          %287 = sbr.rel (%p285) target = $region28
        $region27: #{tpu_custom_call.1} parent=11 // pred_region
          _
        $region28: #{tpu_custom_call.1} parent=11 // pred_fallthru
          _
        // Predicated region
        $region29: #{tpu_custom_call.1} parent=11 // pred_check
          %p288 = pneg %p154
        $region30: #{tpu_custom_call.1} parent=11 // pred_check_branch
          %290 = sbr.rel (%p288) target = $region32
        $region31: #{tpu_custom_call.1} parent=11 // pred_region
          _
        $region32: #{tpu_custom_call.1} parent=11 // pred_fallthru
          _
        // Predicated region
        $region33: #{tpu_custom_call.1} parent=11 // pred_check
          %p291 = pneg %p175
        $region34: #{tpu_custom_call.1} parent=11 // pred_check_branch
          %293 = sbr.rel (%p291) target = $region36
        $region35: #{tpu_custom_call.1} parent=11 // pred_region
          _
        $region36: #{tpu_custom_call.1} parent=11 // pred_fallthru
          _
        // Predicated region
        $region37: #{tpu_custom_call.1} parent=11 // pred_check
          %p294 = pneg %p196
        $region38: #{tpu_custom_call.1} parent=11 // pred_check_branch
          %296 = sbr.rel (%p294) target = $region40
        $region39: #{tpu_custom_call.1} parent=11 // pred_region
          %s298 = ssub.s32 2048, 2048
          %299 = vsyncadd [#allocation9], %s298
          %s300 = sshll.u32 [#allocation8], 4
          %s301 = int_to_ptr.vmem [resolvable:$true] %s300
          %306 = dma.hbm_to_vmem [thread:$0]  %s7, 2048, %s301, [#allocation9], 128, 128, 8
        $region40: #{tpu_custom_call.1} parent=11 // pred_fallthru
          _
        // Predicated region
        $region41: #{tpu_custom_call.1} parent=11 // pred_check
          %p307 = pneg %p217
        $region42: #{tpu_custom_call.1} parent=11 // pred_check_branch
          %309 = sbr.rel (%p307) target = $region44
        $region43: #{tpu_custom_call.1} parent=11 // pred_region
          _
        $region44: #{tpu_custom_call.1} parent=11 // pred_fallthru
          _
      $region12: #{tpu_custom_call.1} parent=5 // pred_fallthru
        _
      %p310 = scmp.lt.s32.totalorder %s23, 2
      // Predicated region
      $region45: #{tpu_custom_call.1} parent=5 // pred_check
        %p311 = pneg %p310
      $region46: #{tpu_custom_call.1} parent=5 // pred_check_branch
        %313 = sbr.rel (%p311) target = $region48
      $region47: #{tpu_custom_call.1} parent=5 // pred_region
        // Predicated region
        $region49: #{tpu_custom_call.1} parent=47 // pred_check
          %p314 = pneg %p43
        $region50: #{tpu_custom_call.1} parent=47 // pred_check_branch
          %316 = sbr.rel (%p314) target = $region52
        $region51: #{tpu_custom_call.1} parent=47 // pred_region
          %s317 = sand.u32 %s33, 1
          %s318 = scalar_lea.sflag [#allocation3], %s317
          %s319 = sand.u32 %s33, 1
          %s320 = smul.addr %s319, 16
          %s321 = scalar_lea.vmem [#allocation2], %s320
          %s323 = ssub.s32 256, 256
          %324 = vsyncadd %s318, %s323
          %s325 = smul.addr %s23, 2
          %s326 = smul.addr %s325, 128
          %s327 = scalar_lea.hbm %s0, %s326
          %s328 = sshll.u32 %s321, 4
          %s329 = int_to_ptr.vmem [resolvable:$true] %s328
          %334 = dma.hbm_to_vmem [thread:$0]  %s327, 256, %s329, %s318, 128, 128, 8
        $region52: #{tpu_custom_call.1} parent=47 // pred_fallthru
          _
      $region48: #{tpu_custom_call.1} parent=5 // pred_fallthru
        _
      %p335 = scmp.le.s32.totalorder 1, %s23
      %p336 = scmp.lt.s32.totalorder %s23, 3
      %p337 = pnand %p335, %p336
      %p338 = pneg %p337
      // Predicated region
      $region53: #{tpu_custom_call.1} parent=5 // pred_check
        _
      $region54: #{tpu_custom_call.1} parent=5 // pred_check_branch
        %340 = sbr.rel (%p337) target = $region56
      $region55: #{tpu_custom_call.1} parent=5 // pred_region
        %s341 = ssub.s32 %s23, 1
        %s342 = sand.u32 %s36, 1
        %s343 = scalar_lea.sflag [#allocation3], %s342
        %s344 = sand.u32 %s36, 1
        %s345 = smul.addr %s344, 16
        %s346 = scalar_lea.vmem [#allocation2], %s345
        // Predicated region
        $region57: #{tpu_custom_call.1} parent=55 // pred_check
          %p347 = pneg %p49
        $region58: #{tpu_custom_call.1} parent=55 // pred_check_branch
          %349 = sbr.rel (%p347) target = $region60
        $region59: #{tpu_custom_call.1} parent=55 // pred_region
          %350 = dma.done %s343, 256
        $region60: #{tpu_custom_call.1} parent=55 // pred_fallthru
          _
        // Predicated region
        $region61: #{tpu_custom_call.1} parent=55 // pred_check
          %p351 = pneg %p70
        $region62: #{tpu_custom_call.1} parent=55 // pred_check_branch
          %353 = sbr.rel (%p351) target = $region64
        $region63: #{tpu_custom_call.1} parent=55 // pred_region
          %354 = dma.done [#allocation6], 64
        $region64: #{tpu_custom_call.1} parent=55 // pred_fallthru
          _
        // Predicated region
        $region65: #{tpu_custom_call.1} parent=55 // pred_check
          %p355 = pneg %p112
        $region66: #{tpu_custom_call.1} parent=55 // pred_check_branch
          %357 = sbr.rel (%p355) target = $region68
        $region67: #{tpu_custom_call.1} parent=55 // pred_region
          %358 = dma.done [#allocation6], 2048
        $region68: #{tpu_custom_call.1} parent=55 // pred_fallthru
          _
        // Predicated region
        $region69: #{tpu_custom_call.1} parent=55 // pred_check
          %p359 = pneg %p196
        $region70: #{tpu_custom_call.1} parent=55 // pred_check_branch
          %361 = sbr.rel (%p359) target = $region72
        $region71: #{tpu_custom_call.1} parent=55 // pred_region
          %362 = dma.done [#allocation9], 2048
        $region72: #{tpu_custom_call.1} parent=55 // pred_fallthru
          _
        %s363 = sand.u32 %s36, 1
        %s364 = scalar_lea.sflag [#allocation3], %s363
        %s365 = sand.u32 %s36, 1
        %s366 = smul.addr %s365, 16
        %s367 = scalar_lea.vmem [#allocation2], %s366
        %p368 = pneg %p49
        %p369 = pneg %p46
        %p370 = pneg %p70
        %p371 = pneg %p67
        %p372 = pneg %p91
        %p373 = pneg %p88
        %p374 = pneg %p112
        %p375 = pneg %p109
        %p376 = pneg %p133
        %p377 = pneg %p130
        %p378 = pneg %p154
        %p379 = pneg %p151
        %p380 = pneg %p175
        %p381 = pneg %p172
        %p382 = pneg %p196
        %p383 = pneg %p193
        %p384 = pneg %p217
        %p385 = pneg %p214
        %p386 = pneg %p243
        %p387 = pneg %p240
        %s388 = sand.u32 %s230, 1
        %s389 = scalar_lea.sflag [#allocation4], %s388
        %s390 = sand.u32 %s230, 1
        %s391 = smul.addr %s390, 16
        %s392 = scalar_lea.vmem [#allocation10], %s391
        %v393 = vld [vmem:[%s346] sm:$0xff]
        %v394 = vld [vmem:[%s346 + $0x8] sm:$0xff]
        %v395 = vlaneseq
        %v396 = vshrl.u32 %v395, 7
        %v397 = vadd.s32 %v396, 8
        %vm398 = vcmp.ge.s32.totalorder %v396, 1
        %vm399 = vcmp.ge.s32.totalorder %v397, 1
        %v400 = vsel %vm398, 1, 0
        %v401 = vsel %vm399, 1, 0
        %v402 = vcvt.s32.f32 %v400
        %v403 = vcvt.s32.f32 %v401
        %vm404 = vcmp.lt.s32.totalorder %v396, 15
        %vm405 = vcmp.lt.s32.totalorder %v397, 15
        %v406 = vsel %vm404, 1, 0
        %v407 = vsel %vm405, 1, 0
        %v408 = vcvt.s32.f32 %v406
        %v409 = vcvt.s32.f32 %v407
        %vm410 = vcmp.ge.s32.totalorder %v396, 2
        %vm411 = vcmp.ge.s32.totalorder %v397, 2
        %v412 = vsel %vm410, 1, 0
        %v413 = vsel %vm411, 1, 0
        %v414 = vcvt.s32.f32 %v412
        %v415 = vcvt.s32.f32 %v413
        %vm416 = vcmp.lt.s32.totalorder %v396, 14
        %vm417 = vcmp.lt.s32.totalorder %v397, 14
        %v418 = vsel %vm416, 1, 0
        %v419 = vsel %vm417, 1, 0
        %v420 = vcvt.s32.f32 %v418
        %v421 = vcvt.s32.f32 %v419
        %v422 = vrot.slane %v393, 6
        %v423 = vrot.slane %v394, 6
        %vm424 = vcmp.lt.s32.totalorder %v396, 2
        %v425 = vsel %vm424, %v422, %v423
        %v426 = vsel %vm424, %v423, %v422
        %v427 = vmul.f32 %v426, %v414
        %v428 = vmul.f32 %v425, %v415
        %v429 = vrot.slane %v393, 2
        %v430 = vrot.slane %v394, 2
        %vm431 = vcmp.lt.s32.totalorder %v396, 6
        %v432 = vsel %vm431, %v429, %v430
        %v433 = vsel %vm431, %v430, %v429
        %v434 = vmul.f32 %v432, %v420
        %v435 = vmul.f32 %v433, %v421
        %v436 = vld [vmem:[#allocation5] sm:$0x1]
        %v437 = vlaneseq
        %v438 = vshrl.u32 %v437, 7
        %v439 = vsub.s32 0, %v438
        %v440 = vrot.slane %v436, %v439
        %v441 = vmul.f32 %v440, %v427
        %v442 = vmul.f32 %v440, %v428
        %v443 = vld [vmem:[#allocation5 + $0x1] sm:$0x1]
        %v444 = vlaneseq
        %v445 = vshrl.u32 %v444, 7
        %v446 = vsub.s32 0, %v445
        %v447 = vrot.slane %v443, %v446
        %v448 = vmul.f32 %v447, %v393
        %v449 = vmul.f32 %v447, %v394
        %v450 = vadd.f32 %v441, %v448
        %v451 = vadd.f32 %v442, %v449
        %v452 = vld [vmem:[#allocation5 + $0x2] sm:$0x1]
        %v453 = vlaneseq
        %v454 = vshrl.u32 %v453, 7
        %v455 = vsub.s32 0, %v454
        %v456 = vrot.slane %v452, %v455
        %v457 = vmul.f32 %v456, %v434
        %v458 = vmul.f32 %v456, %v435
        %v459 = vadd.f32 %v450, %v457
        %v460 = vadd.f32 %v451, %v458
        %v461 = vmax.f32 %v459, 0.0
        %v462 = vmax.f32 %v460, 0.0
        %463 = vrot.lane.b32.xlu0 %v461, 16
        %v464 = vpop.permute.xlu0 %463
        %465 = vrot.lane.b32.xlu0 %v462, 16
        %v466 = vpop.permute.xlu0 %465
        %467 = vrot.lane.b32.xlu0 %v461, 112
        %v468 = vpop.permute.xlu0 %467
        %469 = vrot.lane.b32.xlu0 %v462, 112
        %v470 = vpop.permute.xlu0 %469
        %v471 = vld [vmem:[%s2] sm:$0x1]
        %v472 = vlaneseq
        %v473 = vshrl.u32 %v472, 7
        %v474 = vsub.s32 0, %v473
        %v475 = vrot.slane %v471, %v474
        %v476 = vmul.f32 %v475, %v464
        %v477 = vmul.f32 %v475, %v466
        %v478 = vld [vmem:[%s2 + $0x1] sm:$0x1]
        %v479 = vlaneseq
        %v480 = vshrl.u32 %v479, 7
        %v481 = vsub.s32 0, %v480
        %v482 = vrot.slane %v478, %v481
        %v483 = vmul.f32 %v482, %v461
        %v484 = vmul.f32 %v482, %v462
        %v485 = vadd.f32 %v476, %v483
        %v486 = vadd.f32 %v477, %v484
        %v487 = vld [vmem:[%s2 + $0x2] sm:$0x1]
        %v488 = vlaneseq
        %v489 = vshrl.u32 %v488, 7
        %v490 = vsub.s32 0, %v489
        %v491 = vrot.slane %v487, %v490
        %v492 = vmul.f32 %v491, %v468
        %v493 = vmul.f32 %v491, %v470
        %v494 = vadd.f32 %v485, %v492
        %v495 = vadd.f32 %v486, %v493
        %v496 = vld [vmem:[#allocation7] sm:$0xff]
        %v497 = vld [vmem:[#allocation7 + $0x8] sm:$0xff]
        %v498 = vld [vmem:[#allocation7 + $0x10] sm:$0xff]
        %v499 = vld [vmem:[#allocation7 + $0x18] sm:$0xff]
        %v500 = vld [vmem:[#allocation7 + $0x20] sm:$0xff]
        %v501 = vld [vmem:[#allocation7 + $0x28] sm:$0xff]
        %v502 = vld [vmem:[#allocation7 + $0x30] sm:$0xff]
        %v503 = vld [vmem:[#allocation7 + $0x38] sm:$0xff]
        %v504 = vld [vmem:[#allocation7 + $0x40] sm:$0xff]
        %v505 = vld [vmem:[#allocation7 + $0x48] sm:$0xff]
        %v506 = vld [vmem:[#allocation7 + $0x50] sm:$0xff]
        %v507 = vld [vmem:[#allocation7 + $0x58] sm:$0xff]
        %v508 = vld [vmem:[#allocation7 + $0x60] sm:$0xff]
        %v509 = vld [vmem:[#allocation7 + $0x68] sm:$0xff]
        %v510 = vld [vmem:[#allocation7 + $0x70] sm:$0xff]
        %v511 = vld [vmem:[#allocation7 + $0x78] sm:$0xff]
        %v512 = vld [vmem:[%s4] sm:$0x1]
        %v514 = vlaneseq
        %v515 = vshrl.u32 %v514, 7
        %v516 = vsub.s32 0, %v515
        %v517 = vrot.slane %v512, %v516
        %519 = vmatprep.subr.mxu0 0.0
        %v520 = vand.u32 %v496, 4294901760
        %521 = vmatpush1.msra.mxu0 %v520
        %522 = vmatprep.subr.mxu0 0.0
        %v523 = vand.u32 %v497, 4294901760
        %524 = vmatpush1.msra.mxu0 %v523
        %525 = vmatprep.subr.mxu0 0.0
        %v526 = vand.u32 %v498, 4294901760
        %527 = vmatpush1.msra.mxu0 %v526
        %528 = vmatprep.subr.mxu0 0.0
        %v529 = vand.u32 %v499, 4294901760
        %530 = vmatpush1.msra.mxu0 %v529
        %531 = vmatprep.subr.mxu0 0.0
        %v532 = vand.u32 %v500, 4294901760
        %533 = vmatpush1.msra.mxu0 %v532
        %534 = vmatprep.subr.mxu0 0.0
        %v535 = vand.u32 %v501, 4294901760
        %536 = vmatpush1.msra.mxu0 %v535
        %537 = vmatprep.subr.mxu0 0.0
        %v538 = vand.u32 %v502, 4294901760
        %539 = vmatpush1.msra.mxu0 %v538
        %540 = vmatprep.subr.mxu0 0.0
        %v541 = vand.u32 %v503, 4294901760
        %542 = vmatpush1.msra.mxu0 %v541
        %543 = vmatprep.subr.mxu0 0.0
        %v544 = vand.u32 %v504, 4294901760
        %545 = vmatpush1.msra.mxu0 %v544
        %546 = vmatprep.subr.mxu0 0.0
        %v547 = vand.u32 %v505, 4294901760
        %548 = vmatpush1.msra.mxu0 %v547
        %549 = vmatprep.subr.mxu0 0.0
        %v550 = vand.u32 %v506, 4294901760
        %551 = vmatpush1.msra.mxu0 %v550
        %552 = vmatprep.subr.mxu0 0.0
        %v553 = vand.u32 %v507, 4294901760
        %554 = vmatpush1.msra.mxu0 %v553
        %555 = vmatprep.subr.mxu0 0.0
        %v556 = vand.u32 %v508, 4294901760
        %557 = vmatpush1.msra.mxu0 %v556
        %558 = vmatprep.subr.mxu0 0.0
        %v559 = vand.u32 %v509, 4294901760
        %560 = vmatpush1.msra.mxu0 %v559
        %561 = vmatprep.subr.mxu0 0.0
        %v562 = vand.u32 %v510, 4294901760
        %563 = vmatpush1.msra.mxu0 %v562
        %564 = vmatprep.subr.mxu0 0.0
        %v565 = vand.u32 %v511, 4294901760
        %566 = vmatpush1.msra.mxu0 %v565
        %567 = vmatprep.subr.mxu0 0.0
        %568 = vmatpush1.msra.mxu0 0.0
        %569 = vmatprep.subr.mxu0 0.0
        %570 = vmatpush1.msra.mxu0 0.0
        %571 = vmatprep.subr.mxu0 0.0
        %572 = vmatpush1.msra.mxu0 0.0
        %573 = vmatprep.subr.mxu0 0.0
        %574 = vmatpush1.msra.mxu0 0.0
        %575 = vmatprep.subr.mxu0 0.0
        %576 = vmatpush1.msra.mxu0 0.0
        %577 = vmatprep.subr.mxu0 0.0
        %578 = vmatpush1.msra.mxu0 0.0
        %579 = vmatprep.subr.mxu0 0.0
        %580 = vmatpush1.msra.mxu0 0.0
        %581 = vmatprep.subr.mxu0 0.0
        %582 = vmatpush1.msra.mxu0 0.0
        %583 = vmatprep.subr.mxu0 0.0
        %584 = vmatpush1.msra.mxu0 0.0
        %585 = vmatprep.subr.mxu0 0.0
        %586 = vmatpush1.msra.mxu0 0.0
        %587 = vmatprep.subr.mxu0 0.0
        %588 = vmatpush1.msra.mxu0 0.0
        %589 = vmatprep.subr.mxu0 0.0
        %590 = vmatpush1.msra.mxu0 0.0
        %591 = vmatprep.subr.mxu0 0.0
        %592 = vmatpush1.msra.mxu0 0.0
        %593 = vmatprep.subr.mxu0 0.0
        %594 = vmatpush1.msra.mxu0 0.0
        %595 = vmatprep.subr.mxu0 0.0
        %596 = vmatpush1.msra.mxu0 0.0
        %597 = vmatprep.subr.mxu0 0.0
        %598 = vmatpush1.msra.mxu0 0.0
        %599 = vmatprep.mubr.f32.mxu0 0.0
        %v600 = vand.u32 %v494, 4294901760
        %v601 = vsub.f32 %v494, %v600
        %v602 = vand.u32 %v601, 4294901760
        %v603 = vsub.f32 %v601, %v602
        %v604 = vand.u32 %v603, 4294901760
        %605 = vmatmul.mubr.f32.gmra.mrb[0].mxu0 %v604
        %v606 = vpop.f32.mrb[0].mxu0
        %v607 = vadd.f32 %v517, %v606
        %v608 = vpop.f32.mrb[0].mxu0
        %609 = vmatprep.mubr.f32.mxu0 0.0
        %v610 = vand.u32 %v495, 4294901760
        %v611 = vsub.f32 %v495, %v610
        %v612 = vand.u32 %v611, 4294901760
        %v613 = vsub.f32 %v611, %v612
        %v614 = vand.u32 %v613, 4294901760
        %615 = vmatmul.mubr.f32.gmra.mrb[0].mxu0 %v614
        %v616 = vpop.f32.mrb[0].mxu0
        %v617 = vadd.f32 %v517, %v616
        %v618 = vpop.f32.mrb[0].mxu0
        %619 = vdwg.mxu0
        %620 = vmatprep.subr.mxu0 0.0
        %v621 = vand.u32 %v496, 4294901760
        %v622 = vsub.f32 %v496, %v621
        %v623 = vand.u32 %v622, 4294901760
        %v624 = vsub.f32 %v622, %v623
        %v625 = vand.u32 %v624, 4294901760
        %626 = vmatpush1.msra.mxu0 %v625
        %627 = vmatprep.subr.mxu0 0.0
        %v628 = vand.u32 %v497, 4294901760
        %v629 = vsub.f32 %v497, %v628
        %v630 = vand.u32 %v629, 4294901760
        %v631 = vsub.f32 %v629, %v630
        %v632 = vand.u32 %v631, 4294901760
        %633 = vmatpush1.msra.mxu0 %v632
        %634 = vmatprep.subr.mxu0 0.0
        %v635 = vand.u32 %v498, 4294901760
        %v636 = vsub.f32 %v498, %v635
        %v637 = vand.u32 %v636, 4294901760
        %v638 = vsub.f32 %v636, %v637
        %v639 = vand.u32 %v638, 4294901760
        %640 = vmatpush1.msra.mxu0 %v639
        %641 = vmatprep.subr.mxu0 0.0
        %v642 = vand.u32 %v499, 4294901760
        %v643 = vsub.f32 %v499, %v642
        %v644 = vand.u32 %v643, 4294901760
        %v645 = vsub.f32 %v643, %v644
        %v646 = vand.u32 %v645, 4294901760
        %647 = vmatpush1.msra.mxu0 %v646
        %648 = vmatprep.subr.mxu0 0.0
        %v649 = vand.u32 %v500, 4294901760
        %v650 = vsub.f32 %v500, %v649
        %v651 = vand.u32 %v650, 4294901760
        %v652 = vsub.f32 %v650, %v651
        %v653 = vand.u32 %v652, 4294901760
        %654 = vmatpush1.msra.mxu0 %v653
        %655 = vmatprep.subr.mxu0 0.0
        %v656 = vand.u32 %v501, 4294901760
        %v657 = vsub.f32 %v501, %v656
        %v658 = vand.u32 %v657, 4294901760
        %v659 = vsub.f32 %v657, %v658
        %v660 = vand.u32 %v659, 4294901760
        %661 = vmatpush1.msra.mxu0 %v660
        %662 = vmatprep.subr.mxu0 0.0
        %v663 = vand.u32 %v502, 4294901760
        %v664 = vsub.f32 %v502, %v663
        %v665 = vand.u32 %v664, 4294901760
        %v666 = vsub.f32 %v664, %v665
        %v667 = vand.u32 %v666, 4294901760
        %668 = vmatpush1.msra.mxu0 %v667
        %669 = vmatprep.subr.mxu0 0.0
        %v670 = vand.u32 %v503, 4294901760
        %v671 = vsub.f32 %v503, %v670
        %v672 = vand.u32 %v671, 4294901760
        %v673 = vsub.f32 %v671, %v672
        %v674 = vand.u32 %v673, 4294901760
        %675 = vmatpush1.msra.mxu0 %v674
        %676 = vmatprep.subr.mxu0 0.0
        %v677 = vand.u32 %v504, 4294901760
        %v678 = vsub.f32 %v504, %v677
        %v679 = vand.u32 %v678, 4294901760
        %v680 = vsub.f32 %v678, %v679
        %v681 = vand.u32 %v680, 4294901760
        %682 = vmatpush1.msra.mxu0 %v681
        %683 = vmatprep.subr.mxu0 0.0
        %v684 = vand.u32 %v505, 4294901760
        %v685 = vsub.f32 %v505, %v684
        %v686 = vand.u32 %v685, 4294901760
        %v687 = vsub.f32 %v685, %v686
        %v688 = vand.u32 %v687, 4294901760
        %689 = vmatpush1.msra.mxu0 %v688
        %690 = vmatprep.subr.mxu0 0.0
        %v691 = vand.u32 %v506, 4294901760
        %v692 = vsub.f32 %v506, %v691
        %v693 = vand.u32 %v692, 4294901760
        %v694 = vsub.f32 %v692, %v693
        %v695 = vand.u32 %v694, 4294901760
        %696 = vmatpush1.msra.mxu0 %v695
        %697 = vmatprep.subr.mxu0 0.0
        %v698 = vand.u32 %v507, 4294901760
        %v699 = vsub.f32 %v507, %v698
        %v700 = vand.u32 %v699, 4294901760
        %v701 = vsub.f32 %v699, %v700
        %v702 = vand.u32 %v701, 4294901760
        %703 = vmatpush1.msra.mxu0 %v702
        %704 = vmatprep.subr.mxu0 0.0
        %v705 = vand.u32 %v508, 4294901760
        %v706 = vsub.f32 %v508, %v705
        %v707 = vand.u32 %v706, 4294901760
        %v708 = vsub.f32 %v706, %v707
        %v709 = vand.u32 %v708, 4294901760
        %710 = vmatpush1.msra.mxu0 %v709
        %711 = vmatprep.subr.mxu0 0.0
        %v712 = vand.u32 %v509, 4294901760
        %v713 = vsub.f32 %v509, %v712
        %v714 = vand.u32 %v713, 4294901760
        %v715 = vsub.f32 %v713, %v714
        %v716 = vand.u32 %v715, 4294901760
        %717 = vmatpush1.msra.mxu0 %v716
        %718 = vmatprep.subr.mxu0 0.0
        %v719 = vand.u32 %v510, 4294901760
        %v720 = vsub.f32 %v510, %v719
        %v721 = vand.u32 %v720, 4294901760
        %v722 = vsub.f32 %v720, %v721
        %v723 = vand.u32 %v722, 4294901760
        %724 = vmatpush1.msra.mxu0 %v723
        %725 = vmatprep.subr.mxu0 0.0
        %v726 = vand.u32 %v511, 4294901760
        %v727 = vsub.f32 %v511, %v726
        %v728 = vand.u32 %v727, 4294901760
        %v729 = vsub.f32 %v727, %v728
        %v730 = vand.u32 %v729, 4294901760
        %731 = vmatpush1.msra.mxu0 %v730
        %732 = vmatprep.subr.mxu0 0.0
        %733 = vmatpush1.msra.mxu0 0.0
        %734 = vmatprep.subr.mxu0 0.0
        %735 = vmatpush1.msra.mxu0 0.0
        %736 = vmatprep.subr.mxu0 0.0
        %737 = vmatpush1.msra.mxu0 0.0
        %738 = vmatprep.subr.mxu0 0.0
        %739 = vmatpush1.msra.mxu0 0.0
        %740 = vmatprep.subr.mxu0 0.0
        %741 = vmatpush1.msra.mxu0 0.0
        %742 = vmatprep.subr.mxu0 0.0
        %743 = vmatpush1.msra.mxu0 0.0
        %744 = vmatprep.subr.mxu0 0.0
        %745 = vmatpush1.msra.mxu0 0.0
        %746 = vmatprep.subr.mxu0 0.0
        %747 = vmatpush1.msra.mxu0 0.0
        %748 = vmatprep.subr.mxu0 0.0
        %749 = vmatpush1.msra.mxu0 0.0
        %750 = vmatprep.subr.mxu0 0.0
        %751 = vmatpush1.msra.mxu0 0.0
        %752 = vmatprep.subr.mxu0 0.0
        %753 = vmatpush1.msra.mxu0 0.0
        %754 = vmatprep.subr.mxu0 0.0
        %755 = vmatpush1.msra.mxu0 0.0
        %756 = vmatprep.subr.mxu0 0.0
        %757 = vmatpush1.msra.mxu0 0.0
        %758 = vmatprep.subr.mxu0 0.0
        %759 = vmatpush1.msra.mxu0 0.0
        %760 = vmatprep.subr.mxu0 0.0
        %761 = vmatpush1.msra.mxu0 0.0
        %762 = vmatprep.subr.mxu0 0.0
        %763 = vmatpush1.msra.mxu0 0.0
        %764 = vmatprep.mubr.f32.mxu0 0.0
        %v765 = vand.u32 %v494, 4294901760
        %766 = vmatmul.mubr.f32.gmra.mrb[0].mxu0 %v765
        %v767 = vpop.f32.mrb[0].mxu0
        %v768 = vadd.f32 %v607, %v767
        %v769 = vpop.f32.mrb[0].mxu0
        %770 = vmatprep.mubr.f32.mxu0 0.0
        %v771 = vand.u32 %v495, 4294901760
        %772 = vmatmul.mubr.f32.gmra.mrb[0].mxu0 %v771
        %v773 = vpop.f32.mrb[0].mxu0
        %v774 = vadd.f32 %v617, %v773
        %v775 = vpop.f32.mrb[0].mxu0
        %776 = vdwg.mxu0
        %777 = vmatprep.subr.mxu0 0.0
        %v778 = vand.u32 %v496, 4294901760
        %v779 = vsub.f32 %v496, %v778
        %780 = vmatpush1.msra.mxu0 %v779
        %781 = vmatprep.subr.mxu0 0.0
        %v782 = vand.u32 %v497, 4294901760
        %v783 = vsub.f32 %v497, %v782
        %784 = vmatpush1.msra.mxu0 %v783
        %785 = vmatprep.subr.mxu0 0.0
        %v786 = vand.u32 %v498, 4294901760
        %v787 = vsub.f32 %v498, %v786
        %788 = vmatpush1.msra.mxu0 %v787
        %789 = vmatprep.subr.mxu0 0.0
        %v790 = vand.u32 %v499, 4294901760
        %v791 = vsub.f32 %v499, %v790
        %792 = vmatpush1.msra.mxu0 %v791
        %793 = vmatprep.subr.mxu0 0.0
        %v794 = vand.u32 %v500, 4294901760
        %v795 = vsub.f32 %v500, %v794
        %796 = vmatpush1.msra.mxu0 %v795
        %797 = vmatprep.subr.mxu0 0.0
        %v798 = vand.u32 %v501, 4294901760
        %v799 = vsub.f32 %v501, %v798
        %800 = vmatpush1.msra.mxu0 %v799
        %801 = vmatprep.subr.mxu0 0.0
        %v802 = vand.u32 %v502, 4294901760
        %v803 = vsub.f32 %v502, %v802
        %804 = vmatpush1.msra.mxu0 %v803
        %805 = vmatprep.subr.mxu0 0.0
        %v806 = vand.u32 %v503, 4294901760
        %v807 = vsub.f32 %v503, %v806
        %808 = vmatpush1.msra.mxu0 %v807
        %809 = vmatprep.subr.mxu0 0.0
        %v810 = vand.u32 %v504, 4294901760
        %v811 = vsub.f32 %v504, %v810
        %812 = vmatpush1.msra.mxu0 %v811
        %813 = vmatprep.subr.mxu0 0.0
        %v814 = vand.u32 %v505, 4294901760
        %v815 = vsub.f32 %v505, %v814
        %816 = vmatpush1.msra.mxu0 %v815
        %817 = vmatprep.subr.mxu0 0.0
        %v818 = vand.u32 %v506, 4294901760
        %v819 = vsub.f32 %v506, %v818
        %820 = vmatpush1.msra.mxu0 %v819
        %821 = vmatprep.subr.mxu0 0.0
        %v822 = vand.u32 %v507, 4294901760
        %v823 = vsub.f32 %v507, %v822
        %824 = vmatpush1.msra.mxu0 %v823
        %825 = vmatprep.subr.mxu0 0.0
        %v826 = vand.u32 %v508, 4294901760
        %v827 = vsub.f32 %v508, %v826
        %828 = vmatpush1.msra.mxu0 %v827
        %829 = vmatprep.subr.mxu0 0.0
        %v830 = vand.u32 %v509, 4294901760
        %v831 = vsub.f32 %v509, %v830
        %832 = vmatpush1.msra.mxu0 %v831
        %833 = vmatprep.subr.mxu0 0.0
        %v834 = vand.u32 %v510, 4294901760
        %v835 = vsub.f32 %v510, %v834
        %836 = vmatpush1.msra.mxu0 %v835
        %837 = vmatprep.subr.mxu0 0.0
        %v838 = vand.u32 %v511, 4294901760
        %v839 = vsub.f32 %v511, %v838
        %840 = vmatpush1.msra.mxu0 %v839
        %841 = vmatprep.subr.mxu0 0.0
        %842 = vmatpush1.msra.mxu0 0.0
        %843 = vmatprep.subr.mxu0 0.0
        %844 = vmatpush1.msra.mxu0 0.0
        %845 = vmatprep.subr.mxu0 0.0
        %846 = vmatpush1.msra.mxu0 0.0
        %847 = vmatprep.subr.mxu0 0.0
        %848 = vmatpush1.msra.mxu0 0.0
        %849 = vmatprep.subr.mxu0 0.0
        %850 = vmatpush1.msra.mxu0 0.0
        %851 = vmatprep.subr.mxu0 0.0
        %852 = vmatpush1.msra.mxu0 0.0
        %853 = vmatprep.subr.mxu0 0.0
        %854 = vmatpush1.msra.mxu0 0.0
        %855 = vmatprep.subr.mxu0 0.0
        %856 = vmatpush1.msra.mxu0 0.0
        %857 = vmatprep.subr.mxu0 0.0
        %858 = vmatpush1.msra.mxu0 0.0
        %859 = vmatprep.subr.mxu0 0.0
        %860 = vmatpush1.msra.mxu0 0.0
        %861 = vmatprep.subr.mxu0 0.0
        %862 = vmatpush1.msra.mxu0 0.0
        %863 = vmatprep.subr.mxu0 0.0
        %864 = vmatpush1.msra.mxu0 0.0
        %865 = vmatprep.subr.mxu0 0.0
        %866 = vmatpush1.msra.mxu0 0.0
        %867 = vmatprep.subr.mxu0 0.0
        %868 = vmatpush1.msra.mxu0 0.0
        %869 = vmatprep.subr.mxu0 0.0
        %870 = vmatpush1.msra.mxu0 0.0
        %871 = vmatprep.subr.mxu0 0.0
        %872 = vmatpush1.msra.mxu0 0.0
        %873 = vmatprep.mubr.f32.mxu0 0.0
        %v874 = vand.u32 %v494, 4294901760
        %v875 = vsub.f32 %v494, %v874
        %876 = vmatmul.mubr.f32.gmra.mrb[0].mxu0 %v875
        %v877 = vpop.f32.mrb[0].mxu0
        %v878 = vadd.f32 %v768, %v877
        %v879 = vpop.f32.mrb[0].mxu0
        %880 = vmatprep.mubr.f32.mxu0 0.0
        %v881 = vand.u32 %v495, 4294901760
        %v882 = vsub.f32 %v495, %v881
        %883 = vmatmul.mubr.f32.gmra.mrb[0].mxu0 %v882
        %v884 = vpop.f32.mrb[0].mxu0
        %v885 = vadd.f32 %v774, %v884
        %v886 = vpop.f32.mrb[0].mxu0
        %887 = vdwg.mxu0
        %888 = vmatprep.subr.mxu0 0.0
        %v889 = vand.u32 %v496, 4294901760
        %890 = vmatpush1.msra.mxu0 %v889
        %891 = vmatprep.subr.mxu0 0.0
        %v892 = vand.u32 %v497, 4294901760
        %893 = vmatpush1.msra.mxu0 %v892
        %894 = vmatprep.subr.mxu0 0.0
        %v895 = vand.u32 %v498, 4294901760
        %896 = vmatpush1.msra.mxu0 %v895
        %897 = vmatprep.subr.mxu0 0.0
        %v898 = vand.u32 %v499, 4294901760
        %899 = vmatpush1.msra.mxu0 %v898
        %900 = vmatprep.subr.mxu0 0.0
        %v901 = vand.u32 %v500, 4294901760
        %902 = vmatpush1.msra.mxu0 %v901
        %903 = vmatprep.subr.mxu0 0.0
        %v904 = vand.u32 %v501, 4294901760
        %905 = vmatpush1.msra.mxu0 %v904
        %906 = vmatprep.subr.mxu0 0.0
        %v907 = vand.u32 %v502, 4294901760
        %908 = vmatpush1.msra.mxu0 %v907
        %909 = vmatprep.subr.mxu0 0.0
        %v910 = vand.u32 %v503, 4294901760
        %911 = vmatpush1.msra.mxu0 %v910
        %912 = vmatprep.subr.mxu0 0.0
        %v913 = vand.u32 %v504, 4294901760
        %914 = vmatpush1.msra.mxu0 %v913
        %915 = vmatprep.subr.mxu0 0.0
        %v916 = vand.u32 %v505, 4294901760
        %917 = vmatpush1.msra.mxu0 %v916
        %918 = vmatprep.subr.mxu0 0.0
        %v919 = vand.u32 %v506, 4294901760
        %920 = vmatpush1.msra.mxu0 %v919
        %921 = vmatprep.subr.mxu0 0.0
        %v922 = vand.u32 %v507, 4294901760
        %923 = vmatpush1.msra.mxu0 %v922
        %924 = vmatprep.subr.mxu0 0.0
        %v925 = vand.u32 %v508, 4294901760
        %926 = vmatpush1.msra.mxu0 %v925
        %927 = vmatprep.subr.mxu0 0.0
        %v928 = vand.u32 %v509, 4294901760
        %929 = vmatpush1.msra.mxu0 %v928
        %930 = vmatprep.subr.mxu0 0.0
        %v931 = vand.u32 %v510, 4294901760
        %932 = vmatpush1.msra.mxu0 %v931
        %933 = vmatprep.subr.mxu0 0.0
        %v934 = vand.u32 %v511, 4294901760
        %935 = vmatpush1.msra.mxu0 %v934
        %936 = vmatprep.subr.mxu0 0.0
        %937 = vmatpush1.msra.mxu0 0.0
        %938 = vmatprep.subr.mxu0 0.0
        %939 = vmatpush1.msra.mxu0 0.0
        %940 = vmatprep.subr.mxu0 0.0
        %941 = vmatpush1.msra.mxu0 0.0
        %942 = vmatprep.subr.mxu0 0.0
        %943 = vmatpush1.msra.mxu0 0.0
        %944 = vmatprep.subr.mxu0 0.0
        %945 = vmatpush1.msra.mxu0 0.0
        %946 = vmatprep.subr.mxu0 0.0
        %947 = vmatpush1.msra.mxu0 0.0
        %948 = vmatprep.subr.mxu0 0.0
        %949 = vmatpush1.msra.mxu0 0.0
        %950 = vmatprep.subr.mxu0 0.0
        %951 = vmatpush1.msra.mxu0 0.0
        %952 = vmatprep.subr.mxu0 0.0
        %953 = vmatpush1.msra.mxu0 0.0
        %954 = vmatprep.subr.mxu0 0.0
        %955 = vmatpush1.msra.mxu0 0.0
        %956 = vmatprep.subr.mxu0 0.0
        %957 = vmatpush1.msra.mxu0 0.0
        %958 = vmatprep.subr.mxu0 0.0
        %959 = vmatpush1.msra.mxu0 0.0
        %960 = vmatprep.subr.mxu0 0.0
        %961 = vmatpush1.msra.mxu0 0.0
        %962 = vmatprep.subr.mxu0 0.0
        %963 = vmatpush1.msra.mxu0 0.0
        %964 = vmatprep.subr.mxu0 0.0
        %965 = vmatpush1.msra.mxu0 0.0
        %966 = vmatprep.subr.mxu0 0.0
        %967 = vmatpush1.msra.mxu0 0.0
        %968 = vmatprep.mubr.f32.mxu0 0.0
        %v969 = vand.u32 %v494, 4294901760
        %v970 = vsub.f32 %v494, %v969
        %v971 = vand.u32 %v970, 4294901760
        %972 = vmatmul.mubr.f32.gmra.mrb[0].mxu0 %v971
        %v973 = vpop.f32.mrb[0].mxu0
        %v974 = vadd.f32 %v878, %v973
        %v975 = vpop.f32.mrb[0].mxu0
        %976 = vmatprep.mubr.f32.mxu0 0.0
        %v977 = vand.u32 %v495, 4294901760
        %v978 = vsub.f32 %v495, %v977
        %v979 = vand.u32 %v978, 4294901760
        %980 = vmatmul.mubr.f32.gmra.mrb[0].mxu0 %v979
        %v981 = vpop.f32.mrb[0].mxu0
        %v982 = vadd.f32 %v885, %v981
        %v983 = vpop.f32.mrb[0].mxu0
        %984 = vdwg.mxu0
        %985 = vmatprep.subr.mxu0 0.0
        %v986 = vand.u32 %v496, 4294901760
        %v987 = vsub.f32 %v496, %v986
        %v988 = vand.u32 %v987, 4294901760
        %989 = vmatpush1.msra.mxu0 %v988
        %990 = vmatprep.subr.mxu0 0.0
        %v991 = vand.u32 %v497, 4294901760
        %v992 = vsub.f32 %v497, %v991
        %v993 = vand.u32 %v992, 4294901760
        %994 = vmatpush1.msra.mxu0 %v993
        %995 = vmatprep.subr.mxu0 0.0
        %v996 = vand.u32 %v498, 4294901760
        %v997 = vsub.f32 %v498, %v996
        %v998 = vand.u32 %v997, 4294901760
        %999 = vmatpush1.msra.mxu0 %v998
        %1000 = vmatprep.subr.mxu0 0.0
        %v1001 = vand.u32 %v499, 4294901760
        %v1002 = vsub.f32 %v499, %v1001
        %v1003 = vand.u32 %v1002, 4294901760
        %1004 = vmatpush1.msra.mxu0 %v1003
        %1005 = vmatprep.subr.mxu0 0.0
        %v1006 = vand.u32 %v500, 4294901760
        %v1007 = vsub.f32 %v500, %v1006
        %v1008 = vand.u32 %v1007, 4294901760
        %1009 = vmatpush1.msra.mxu0 %v1008
        %1010 = vmatprep.subr.mxu0 0.0
        %v1011 = vand.u32 %v501, 4294901760
        %v1012 = vsub.f32 %v501, %v1011
        %v1013 = vand.u32 %v1012, 4294901760
        %1014 = vmatpush1.msra.mxu0 %v1013
        %1015 = vmatprep.subr.mxu0 0.0
        %v1016 = vand.u32 %v502, 4294901760
        %v1017 = vsub.f32 %v502, %v1016
        %v1018 = vand.u32 %v1017, 4294901760
        %1019 = vmatpush1.msra.mxu0 %v1018
        %1020 = vmatprep.subr.mxu0 0.0
        %v1021 = vand.u32 %v503, 4294901760
        %v1022 = vsub.f32 %v503, %v1021
        %v1023 = vand.u32 %v1022, 4294901760
        %1024 = vmatpush1.msra.mxu0 %v1023
        %1025 = vmatprep.subr.mxu0 0.0
        %v1026 = vand.u32 %v504, 4294901760
        %v1027 = vsub.f32 %v504, %v1026
        %v1028 = vand.u32 %v1027, 4294901760
        %1029 = vmatpush1.msra.mxu0 %v1028
        %1030 = vmatprep.subr.mxu0 0.0
        %v1031 = vand.u32 %v505, 4294901760
        %v1032 = vsub.f32 %v505, %v1031
        %v1033 = vand.u32 %v1032, 4294901760
        %1034 = vmatpush1.msra.mxu0 %v1033
        %1035 = vmatprep.subr.mxu0 0.0
        %v1036 = vand.u32 %v506, 4294901760
        %v1037 = vsub.f32 %v506, %v1036
        %v1038 = vand.u32 %v1037, 4294901760
        %1039 = vmatpush1.msra.mxu0 %v1038
        %1040 = vmatprep.subr.mxu0 0.0
        %v1041 = vand.u32 %v507, 4294901760
        %v1042 = vsub.f32 %v507, %v1041
        %v1043 = vand.u32 %v1042, 4294901760
        %1044 = vmatpush1.msra.mxu0 %v1043
        %1045 = vmatprep.subr.mxu0 0.0
        %v1046 = vand.u32 %v508, 4294901760
        %v1047 = vsub.f32 %v508, %v1046
        %v1048 = vand.u32 %v1047, 4294901760
        %1049 = vmatpush1.msra.mxu0 %v1048
        %1050 = vmatprep.subr.mxu0 0.0
        %v1051 = vand.u32 %v509, 4294901760
        %v1052 = vsub.f32 %v509, %v1051
        %v1053 = vand.u32 %v1052, 4294901760
        %1054 = vmatpush1.msra.mxu0 %v1053
        %1055 = vmatprep.subr.mxu0 0.0
        %v1056 = vand.u32 %v510, 4294901760
        %v1057 = vsub.f32 %v510, %v1056
        %v1058 = vand.u32 %v1057, 4294901760
        %1059 = vmatpush1.msra.mxu0 %v1058
        %1060 = vmatprep.subr.mxu0 0.0
        %v1061 = vand.u32 %v511, 4294901760
        %v1062 = vsub.f32 %v511, %v1061
        %v1063 = vand.u32 %v1062, 4294901760
        %1064 = vmatpush1.msra.mxu0 %v1063
        %1065 = vmatprep.subr.mxu0 0.0
        %1066 = vmatpush1.msra.mxu0 0.0
        %1067 = vmatprep.subr.mxu0 0.0
        %1068 = vmatpush1.msra.mxu0 0.0
        %1069 = vmatprep.subr.mxu0 0.0
        %1070 = vmatpush1.msra.mxu0 0.0
        %1071 = vmatprep.subr.mxu0 0.0
        %1072 = vmatpush1.msra.mxu0 0.0
        %1073 = vmatprep.subr.mxu0 0.0
        %1074 = vmatpush1.msra.mxu0 0.0
        %1075 = vmatprep.subr.mxu0 0.0
        %1076 = vmatpush1.msra.mxu0 0.0
        %1077 = vmatprep.subr.mxu0 0.0
        %1078 = vmatpush1.msra.mxu0 0.0
        %1079 = vmatprep.subr.mxu0 0.0
        %1080 = vmatpush1.msra.mxu0 0.0
        %1081 = vmatprep.subr.mxu0 0.0
        %1082 = vmatpush1.msra.mxu0 0.0
        %1083 = vmatprep.subr.mxu0 0.0
        %1084 = vmatpush1.msra.mxu0 0.0
        %1085 = vmatprep.subr.mxu0 0.0
        %1086 = vmatpush1.msra.mxu0 0.0
        %1087 = vmatprep.subr.mxu0 0.0
        %1088 = vmatpush1.msra.mxu0 0.0
        %1089 = vmatprep.subr.mxu0 0.0
        %1090 = vmatpush1.msra.mxu0 0.0
        %1091 = vmatprep.subr.mxu0 0.0
        %1092 = vmatpush1.msra.mxu0 0.0
        %1093 = vmatprep.subr.mxu0 0.0
        %1094 = vmatpush1.msra.mxu0 0.0
        %1095 = vmatprep.subr.mxu0 0.0
        %1096 = vmatpush1.msra.mxu0 0.0
        %1097 = vmatprep.mubr.f32.mxu0 0.0
        %v1098 = vand.u32 %v494, 4294901760
        %1099 = vmatmul.mubr.f32.gmra.mrb[0].mxu0 %v1098
        %v1100 = vpop.f32.mrb[0].mxu0
        %v1101 = vadd.f32 %v974, %v1100
        %v1102 = vpop.f32.mrb[0].mxu0
        %1103 = vmatprep.mubr.f32.mxu0 0.0
        %v1104 = vand.u32 %v495, 4294901760
        %1105 = vmatmul.mubr.f32.gmra.mrb[0].mxu0 %v1104
        %v1106 = vpop.f32.mrb[0].mxu0
        %v1107 = vadd.f32 %v982, %v1106
        %v1108 = vpop.f32.mrb[0].mxu0
        %1109 = vdwg.mxu0
        %1110 = vmatprep.subr.mxu0 0.0
        %v1111 = vand.u32 %v496, 4294901760
        %1112 = vmatpush1.msra.mxu0 %v1111
        %1113 = vmatprep.subr.mxu0 0.0
        %v1114 = vand.u32 %v497, 4294901760
        %1115 = vmatpush1.msra.mxu0 %v1114
        %1116 = vmatprep.subr.mxu0 0.0
        %v1117 = vand.u32 %v498, 4294901760
        %1118 = vmatpush1.msra.mxu0 %v1117
        %1119 = vmatprep.subr.mxu0 0.0
        %v1120 = vand.u32 %v499, 4294901760
        %1121 = vmatpush1.msra.mxu0 %v1120
        %1122 = vmatprep.subr.mxu0 0.0
        %v1123 = vand.u32 %v500, 4294901760
        %1124 = vmatpush1.msra.mxu0 %v1123
        %1125 = vmatprep.subr.mxu0 0.0
        %v1126 = vand.u32 %v501, 4294901760
        %1127 = vmatpush1.msra.mxu0 %v1126
        %1128 = vmatprep.subr.mxu0 0.0
        %v1129 = vand.u32 %v502, 4294901760
        %1130 = vmatpush1.msra.mxu0 %v1129
        %1131 = vmatprep.subr.mxu0 0.0
        %v1132 = vand.u32 %v503, 4294901760
        %1133 = vmatpush1.msra.mxu0 %v1132
        %1134 = vmatprep.subr.mxu0 0.0
        %v1135 = vand.u32 %v504, 4294901760
        %1136 = vmatpush1.msra.mxu0 %v1135
        %1137 = vmatprep.subr.mxu0 0.0
        %v1138 = vand.u32 %v505, 4294901760
        %1139 = vmatpush1.msra.mxu0 %v1138
        %1140 = vmatprep.subr.mxu0 0.0
        %v1141 = vand.u32 %v506, 4294901760
        %1142 = vmatpush1.msra.mxu0 %v1141
        %1143 = vmatprep.subr.mxu0 0.0
        %v1144 = vand.u32 %v507, 4294901760
        %1145 = vmatpush1.msra.mxu0 %v1144
        %1146 = vmatprep.subr.mxu0 0.0
        %v1147 = vand.u32 %v508, 4294901760
        %1148 = vmatpush1.msra.mxu0 %v1147
        %1149 = vmatprep.subr.mxu0 0.0
        %v1150 = vand.u32 %v509, 4294901760
        %1151 = vmatpush1.msra.mxu0 %v1150
        %1152 = vmatprep.subr.mxu0 0.0
        %v1153 = vand.u32 %v510, 4294901760
        %1154 = vmatpush1.msra.mxu0 %v1153
        %1155 = vmatprep.subr.mxu0 0.0
        %v1156 = vand.u32 %v511, 4294901760
        %1157 = vmatpush1.msra.mxu0 %v1156
        %1158 = vmatprep.subr.mxu0 0.0
        %1159 = vmatpush1.msra.mxu0 0.0
        %1160 = vmatprep.subr.mxu0 0.0
        %1161 = vmatpush1.msra.mxu0 0.0
        %1162 = vmatprep.subr.mxu0 0.0
        %1163 = vmatpush1.msra.mxu0 0.0
        %1164 = vmatprep.subr.mxu0 0.0
        %1165 = vmatpush1.msra.mxu0 0.0
        %1166 = vmatprep.subr.mxu0 0.0
        %1167 = vmatpush1.msra.mxu0 0.0
        %1168 = vmatprep.subr.mxu0 0.0
        %1169 = vmatpush1.msra.mxu0 0.0
        %1170 = vmatprep.subr.mxu0 0.0
        %1171 = vmatpush1.msra.mxu0 0.0
        %1172 = vmatprep.subr.mxu0 0.0
        %1173 = vmatpush1.msra.mxu0 0.0
        %1174 = vmatprep.subr.mxu0 0.0
        %1175 = vmatpush1.msra.mxu0 0.0
        %1176 = vmatprep.subr.mxu0 0.0
        %1177 = vmatpush1.msra.mxu0 0.0
        %1178 = vmatprep.subr.mxu0 0.0
        %1179 = vmatpush1.msra.mxu0 0.0
        %1180 = vmatprep.subr.mxu0 0.0
        %1181 = vmatpush1.msra.mxu0 0.0
        %1182 = vmatprep.subr.mxu0 0.0
        %1183 = vmatpush1.msra.mxu0 0.0
        %1184 = vmatprep.subr.mxu0 0.0
        %1185 = vmatpush1.msra.mxu0 0.0
        %1186 = vmatprep.subr.mxu0 0.0
        %1187 = vmatpush1.msra.mxu0 0.0
        %1188 = vmatprep.subr.mxu0 0.0
        %1189 = vmatpush1.msra.mxu0 0.0
        %1190 = vmatprep.mubr.f32.mxu0 0.0
        %v1191 = vand.u32 %v494, 4294901760
        %1192 = vmatmul.mubr.f32.gmra.mrb[0].mxu0 %v1191
        %v1193 = vpop.f32.mrb[0].mxu0
        %v1194 = vadd.f32 %v1101, %v1193
        %v1195 = vpop.f32.mrb[0].mxu0
        %1196 = vmatprep.mubr.f32.mxu0 0.0
        %v1197 = vand.u32 %v495, 4294901760
        %1198 = vmatmul.mubr.f32.gmra.mrb[0].mxu0 %v1197
        %v1199 = vpop.f32.mrb[0].mxu0
        %v1200 = vadd.f32 %v1107, %v1199
        %v1201 = vpop.f32.mrb[0].mxu0
        %1202 = vdwg.mxu0
        %v1203 = vmax.f32 %v1194, 0.0
        %v1204 = vmax.f32 %v1200, 0.0
        %v1205 = vrot.slane %v1203, 7
        %v1206 = vrot.slane %v1204, 7
        %vm1207 = vcmp.lt.s32.totalorder %v396, 1
        %v1208 = vsel %vm1207, %v1205, %v1206
        %v1209 = vsel %vm1207, %v1206, %v1205
        %v1210 = vmul.f32 %v1209, %v402
        %v1211 = vmul.f32 %v1208, %v403
        %v1212 = vrot.slane %v1203, 1
        %v1213 = vrot.slane %v1204, 1
        %vm1214 = vcmp.lt.s32.totalorder %v396, 7
        %v1215 = vsel %vm1214, %v1212, %v1213
        %v1216 = vsel %vm1214, %v1213, %v1212
        %v1217 = vmul.f32 %v1215, %v408
        %v1218 = vmul.f32 %v1216, %v409
        %v1219 = vld [vmem:[%s5] sm:$0x1]
        %v1220 = vlaneseq
        %v1221 = vshrl.u32 %v1220, 7
        %v1222 = vsub.s32 0, %v1221
        %v1223 = vrot.slane %v1219, %v1222
        %v1224 = vmul.f32 %v1223, %v1210
        %v1225 = vmul.f32 %v1223, %v1211
        %v1226 = vld [vmem:[%s5 + $0x1] sm:$0x1]
        %v1227 = vlaneseq
        %v1228 = vshrl.u32 %v1227, 7
        %v1229 = vsub.s32 0, %v1228
        %v1230 = vrot.slane %v1226, %v1229
        %v1231 = vmul.f32 %v1230, %v1203
        %v1232 = vmul.f32 %v1230, %v1204
        %v1233 = vadd.f32 %v1224, %v1231
        %v1234 = vadd.f32 %v1225, %v1232
        %v1235 = vld [vmem:[%s5 + $0x2] sm:$0x1]
        %v1236 = vlaneseq
        %v1237 = vshrl.u32 %v1236, 7
        %v1238 = vsub.s32 0, %v1237
        %v1239 = vrot.slane %v1235, %v1238
        %v1240 = vmul.f32 %v1239, %v1217
        %v1241 = vmul.f32 %v1239, %v1218
        %v1242 = vadd.f32 %v1233, %v1240
        %v1243 = vadd.f32 %v1234, %v1241
        %v1244 = vmax.f32 %v1242, 0.0
        %v1245 = vmax.f32 %v1243, 0.0
        %1246 = vrot.lane.b32.xlu0 %v1244, 8
        %v1247 = vpop.permute.xlu0 %1246
        %1248 = vrot.lane.b32.xlu0 %v1245, 8
        %v1249 = vpop.permute.xlu0 %1248
        %1250 = vrot.lane.b32.xlu0 %v1244, 120
        %v1251 = vpop.permute.xlu0 %1250
        %1252 = vrot.lane.b32.xlu0 %v1245, 120
        %v1253 = vpop.permute.xlu0 %1252
        %v1254 = vld [vmem:[%s6] sm:$0x1]
        %v1255 = vlaneseq
        %v1256 = vshrl.u32 %v1255, 7
        %v1257 = vsub.s32 0, %v1256
        %v1258 = vrot.slane %v1254, %v1257
        %v1259 = vmul.f32 %v1258, %v1247
        %v1260 = vmul.f32 %v1258, %v1249
        %v1261 = vld [vmem:[%s6 + $0x1] sm:$0x1]
        %v1262 = vlaneseq
        %v1263 = vshrl.u32 %v1262, 7
        %v1264 = vsub.s32 0, %v1263
        %v1265 = vrot.slane %v1261, %v1264
        %v1266 = vmul.f32 %v1265, %v1244
        %v1267 = vmul.f32 %v1265, %v1245
        %v1268 = vadd.f32 %v1259, %v1266
        %v1269 = vadd.f32 %v1260, %v1267
        %v1270 = vld [vmem:[%s6 + $0x2] sm:$0x1]
        %v1271 = vlaneseq
        %v1272 = vshrl.u32 %v1271, 7
        %v1273 = vsub.s32 0, %v1272
        %v1274 = vrot.slane %v1270, %v1273
        %v1275 = vmul.f32 %v1274, %v1251
        %v1276 = vmul.f32 %v1274, %v1253
        %v1277 = vadd.f32 %v1268, %v1275
        %v1278 = vadd.f32 %v1269, %v1276
        %v1279 = vld [vmem:[#allocation8] sm:$0xff]
        %v1280 = vld [vmem:[#allocation8 + $0x8] sm:$0xff]
        %v1281 = vld [vmem:[#allocation8 + $0x10] sm:$0xff]
        %v1282 = vld [vmem:[#allocation8 + $0x18] sm:$0xff]
        %v1283 = vld [vmem:[#allocation8 + $0x20] sm:$0xff]
        %v1284 = vld [vmem:[#allocation8 + $0x28] sm:$0xff]
        %v1285 = vld [vmem:[#allocation8 + $0x30] sm:$0xff]
        %v1286 = vld [vmem:[#allocation8 + $0x38] sm:$0xff]
        %v1287 = vld [vmem:[#allocation8 + $0x40] sm:$0xff]
        %v1288 = vld [vmem:[#allocation8 + $0x48] sm:$0xff]
        %v1289 = vld [vmem:[#allocation8 + $0x50] sm:$0xff]
        %v1290 = vld [vmem:[#allocation8 + $0x58] sm:$0xff]
        %v1291 = vld [vmem:[#allocation8 + $0x60] sm:$0xff]
        %v1292 = vld [vmem:[#allocation8 + $0x68] sm:$0xff]
        %v1293 = vld [vmem:[#allocation8 + $0x70] sm:$0xff]
        %v1294 = vld [vmem:[#allocation8 + $0x78] sm:$0xff]
        %v1295 = vld [vmem:[%s8] sm:$0x1]
        %v1297 = vlaneseq
        %v1298 = vshrl.u32 %v1297, 7
        %v1299 = vsub.s32 0, %v1298
        %v1300 = vrot.slane %v1295, %v1299
        %1302 = vmatprep.subr.mxu0 0.0
        %v1303 = vand.u32 %v1279, 4294901760
        %1304 = vmatpush1.msra.mxu0 %v1303
        %1305 = vmatprep.subr.mxu0 0.0
        %v1306 = vand.u32 %v1280, 4294901760
        %1307 = vmatpush1.msra.mxu0 %v1306
        %1308 = vmatprep.subr.mxu0 0.0
        %v1309 = vand.u32 %v1281, 4294901760
        %1310 = vmatpush1.msra.mxu0 %v1309
        %1311 = vmatprep.subr.mxu0 0.0
        %v1312 = vand.u32 %v1282, 4294901760
        %1313 = vmatpush1.msra.mxu0 %v1312
        %1314 = vmatprep.subr.mxu0 0.0
        %v1315 = vand.u32 %v1283, 4294901760
        %1316 = vmatpush1.msra.mxu0 %v1315
        %1317 = vmatprep.subr.mxu0 0.0
        %v1318 = vand.u32 %v1284, 4294901760
        %1319 = vmatpush1.msra.mxu0 %v1318
        %1320 = vmatprep.subr.mxu0 0.0
        %v1321 = vand.u32 %v1285, 4294901760
        %1322 = vmatpush1.msra.mxu0 %v1321
        %1323 = vmatprep.subr.mxu0 0.0
        %v1324 = vand.u32 %v1286, 4294901760
        %1325 = vmatpush1.msra.mxu0 %v1324
        %1326 = vmatprep.subr.mxu0 0.0
        %v1327 = vand.u32 %v1287, 4294901760
        %1328 = vmatpush1.msra.mxu0 %v1327
        %1329 = vmatprep.subr.mxu0 0.0
        %v1330 = vand.u32 %v1288, 4294901760
        %1331 = vmatpush1.msra.mxu0 %v1330
        %1332 = vmatprep.subr.mxu0 0.0
        %v1333 = vand.u32 %v1289, 4294901760
        %1334 = vmatpush1.msra.mxu0 %v1333
        %1335 = vmatprep.subr.mxu0 0.0
        %v1336 = vand.u32 %v1290, 4294901760
        %1337 = vmatpush1.msra.mxu0 %v1336
        %1338 = vmatprep.subr.mxu0 0.0
        %v1339 = vand.u32 %v1291, 4294901760
        %1340 = vmatpush1.msra.mxu0 %v1339
        %1341 = vmatprep.subr.mxu0 0.0
        %v1342 = vand.u32 %v1292, 4294901760
        %1343 = vmatpush1.msra.mxu0 %v1342
        %1344 = vmatprep.subr.mxu0 0.0
        %v1345 = vand.u32 %v1293, 4294901760
        %1346 = vmatpush1.msra.mxu0 %v1345
        %1347 = vmatprep.subr.mxu0 0.0
        %v1348 = vand.u32 %v1294, 4294901760
        %1349 = vmatpush1.msra.mxu0 %v1348
        %1350 = vmatprep.subr.mxu0 0.0
        %1351 = vmatpush1.msra.mxu0 0.0
        %1352 = vmatprep.subr.mxu0 0.0
        %1353 = vmatpush1.msra.mxu0 0.0
        %1354 = vmatprep.subr.mxu0 0.0
        %1355 = vmatpush1.msra.mxu0 0.0
        %1356 = vmatprep.subr.mxu0 0.0
        %1357 = vmatpush1.msra.mxu0 0.0
        %1358 = vmatprep.subr.mxu0 0.0
        %1359 = vmatpush1.msra.mxu0 0.0
        %1360 = vmatprep.subr.mxu0 0.0
        %1361 = vmatpush1.msra.mxu0 0.0
        %1362 = vmatprep.subr.mxu0 0.0
        %1363 = vmatpush1.msra.mxu0 0.0
        %1364 = vmatprep.subr.mxu0 0.0
        %1365 = vmatpush1.msra.mxu0 0.0
        %1366 = vmatprep.subr.mxu0 0.0
        %1367 = vmatpush1.msra.mxu0 0.0
        %1368 = vmatprep.subr.mxu0 0.0
        %1369 = vmatpush1.msra.mxu0 0.0
        %1370 = vmatprep.subr.mxu0 0.0
        %1371 = vmatpush1.msra.mxu0 0.0
        %1372 = vmatprep.subr.mxu0 0.0
        %1373 = vmatpush1.msra.mxu0 0.0
        %1374 = vmatprep.subr.mxu0 0.0
        %1375 = vmatpush1.msra.mxu0 0.0
        %1376 = vmatprep.subr.mxu0 0.0
        %1377 = vmatpush1.msra.mxu0 0.0
        %1378 = vmatprep.subr.mxu0 0.0
        %1379 = vmatpush1.msra.mxu0 0.0
        %1380 = vmatprep.subr.mxu0 0.0
        %1381 = vmatpush1.msra.mxu0 0.0
        %1382 = vmatprep.mubr.f32.mxu0 0.0
        %v1383 = vand.u32 %v1277, 4294901760
        %v1384 = vsub.f32 %v1277, %v1383
        %v1385 = vand.u32 %v1384, 4294901760
        %v1386 = vsub.f32 %v1384, %v1385
        %v1387 = vand.u32 %v1386, 4294901760
        %1388 = vmatmul.mubr.f32.gmra.mrb[0].mxu0 %v1387
        %v1389 = vpop.f32.mrb[0].mxu0
        %v1390 = vadd.f32 %v1300, %v1389
        %v1391 = vpop.f32.mrb[0].mxu0
        %1392 = vmatprep.mubr.f32.mxu0 0.0
        %v1393 = vand.u32 %v1278, 4294901760
        %v1394 = vsub.f32 %v1278, %v1393
        %v1395 = vand.u32 %v1394, 4294901760
        %v1396 = vsub.f32 %v1394, %v1395
        %v1397 = vand.u32 %v1396, 4294901760
        %1398 = vmatmul.mubr.f32.gmra.mrb[0].mxu0 %v1397
        %v1399 = vpop.f32.mrb[0].mxu0
        %v1400 = vadd.f32 %v1300, %v1399
        %v1401 = vpop.f32.mrb[0].mxu0
        %1402 = vdwg.mxu0
        %1403 = vmatprep.subr.mxu0 0.0
        %v1404 = vand.u32 %v1279, 4294901760
        %v1405 = vsub.f32 %v1279, %v1404
        %v1406 = vand.u32 %v1405, 4294901760
        %v1407 = vsub.f32 %v1405, %v1406
        %v1408 = vand.u32 %v1407, 4294901760
        %1409 = vmatpush1.msra.mxu0 %v1408
        %1410 = vmatprep.subr.mxu0 0.0
        %v1411 = vand.u32 %v1280, 4294901760
        %v1412 = vsub.f32 %v1280, %v1411
        %v1413 = vand.u32 %v1412, 4294901760
        %v1414 = vsub.f32 %v1412, %v1413
        %v1415 = vand.u32 %v1414, 4294901760
        %1416 = vmatpush1.msra.mxu0 %v1415
        %1417 = vmatprep.subr.mxu0 0.0
        %v1418 = vand.u32 %v1281, 4294901760
        %v1419 = vsub.f32 %v1281, %v1418
        %v1420 = vand.u32 %v1419, 4294901760
        %v1421 = vsub.f32 %v1419, %v1420
        %v1422 = vand.u32 %v1421, 4294901760
        %1423 = vmatpush1.msra.mxu0 %v1422
        %1424 = vmatprep.subr.mxu0 0.0
        %v1425 = vand.u32 %v1282, 4294901760
        %v1426 = vsub.f32 %v1282, %v1425
        %v1427 = vand.u32 %v1426, 4294901760
        %v1428 = vsub.f32 %v1426, %v1427
        %v1429 = vand.u32 %v1428, 4294901760
        %1430 = vmatpush1.msra.mxu0 %v1429
        %1431 = vmatprep.subr.mxu0 0.0
        %v1432 = vand.u32 %v1283, 4294901760
        %v1433 = vsub.f32 %v1283, %v1432
        %v1434 = vand.u32 %v1433, 4294901760
        %v1435 = vsub.f32 %v1433, %v1434
        %v1436 = vand.u32 %v1435, 4294901760
        %1437 = vmatpush1.msra.mxu0 %v1436
        %1438 = vmatprep.subr.mxu0 0.0
        %v1439 = vand.u32 %v1284, 4294901760
        %v1440 = vsub.f32 %v1284, %v1439
        %v1441 = vand.u32 %v1440, 4294901760
        %v1442 = vsub.f32 %v1440, %v1441
        %v1443 = vand.u32 %v1442, 4294901760
        %1444 = vmatpush1.msra.mxu0 %v1443
        %1445 = vmatprep.subr.mxu0 0.0
        %v1446 = vand.u32 %v1285, 4294901760
        %v1447 = vsub.f32 %v1285, %v1446
        %v1448 = vand.u32 %v1447, 4294901760
        %v1449 = vsub.f32 %v1447, %v1448
        %v1450 = vand.u32 %v1449, 4294901760
        %1451 = vmatpush1.msra.mxu0 %v1450
        %1452 = vmatprep.subr.mxu0 0.0
        %v1453 = vand.u32 %v1286, 4294901760
        %v1454 = vsub.f32 %v1286, %v1453
        %v1455 = vand.u32 %v1454, 4294901760
        %v1456 = vsub.f32 %v1454, %v1455
        %v1457 = vand.u32 %v1456, 4294901760
        %1458 = vmatpush1.msra.mxu0 %v1457
        %1459 = vmatprep.subr.mxu0 0.0
        %v1460 = vand.u32 %v1287, 4294901760
        %v1461 = vsub.f32 %v1287, %v1460
        %v1462 = vand.u32 %v1461, 4294901760
        %v1463 = vsub.f32 %v1461, %v1462
        %v1464 = vand.u32 %v1463, 4294901760
        %1465 = vmatpush1.msra.mxu0 %v1464
        %1466 = vmatprep.subr.mxu0 0.0
        %v1467 = vand.u32 %v1288, 4294901760
        %v1468 = vsub.f32 %v1288, %v1467
        %v1469 = vand.u32 %v1468, 4294901760
        %v1470 = vsub.f32 %v1468, %v1469
        %v1471 = vand.u32 %v1470, 4294901760
        %1472 = vmatpush1.msra.mxu0 %v1471
        %1473 = vmatprep.subr.mxu0 0.0
        %v1474 = vand.u32 %v1289, 4294901760
        %v1475 = vsub.f32 %v1289, %v1474
        %v1476 = vand.u32 %v1475, 4294901760
        %v1477 = vsub.f32 %v1475, %v1476
        %v1478 = vand.u32 %v1477, 4294901760
        %1479 = vmatpush1.msra.mxu0 %v1478
        %1480 = vmatprep.subr.mxu0 0.0
        %v1481 = vand.u32 %v1290, 4294901760
        %v1482 = vsub.f32 %v1290, %v1481
        %v1483 = vand.u32 %v1482, 4294901760
        %v1484 = vsub.f32 %v1482, %v1483
        %v1485 = vand.u32 %v1484, 4294901760
        %1486 = vmatpush1.msra.mxu0 %v1485
        %1487 = vmatprep.subr.mxu0 0.0
        %v1488 = vand.u32 %v1291, 4294901760
        %v1489 = vsub.f32 %v1291, %v1488
        %v1490 = vand.u32 %v1489, 4294901760
        %v1491 = vsub.f32 %v1489, %v1490
        %v1492 = vand.u32 %v1491, 4294901760
        %1493 = vmatpush1.msra.mxu0 %v1492
        %1494 = vmatprep.subr.mxu0 0.0
        %v1495 = vand.u32 %v1292, 4294901760
        %v1496 = vsub.f32 %v1292, %v1495
        %v1497 = vand.u32 %v1496, 4294901760
        %v1498 = vsub.f32 %v1496, %v1497
        %v1499 = vand.u32 %v1498, 4294901760
        %1500 = vmatpush1.msra.mxu0 %v1499
        %1501 = vmatprep.subr.mxu0 0.0
        %v1502 = vand.u32 %v1293, 4294901760
        %v1503 = vsub.f32 %v1293, %v1502
        %v1504 = vand.u32 %v1503, 4294901760
        %v1505 = vsub.f32 %v1503, %v1504
        %v1506 = vand.u32 %v1505, 4294901760
        %1507 = vmatpush1.msra.mxu0 %v1506
        %1508 = vmatprep.subr.mxu0 0.0
        %v1509 = vand.u32 %v1294, 4294901760
        %v1510 = vsub.f32 %v1294, %v1509
        %v1511 = vand.u32 %v1510, 4294901760
        %v1512 = vsub.f32 %v1510, %v1511
        %v1513 = vand.u32 %v1512, 4294901760
        %1514 = vmatpush1.msra.mxu0 %v1513
        %1515 = vmatprep.subr.mxu0 0.0
        %1516 = vmatpush1.msra.mxu0 0.0
        %1517 = vmatprep.subr.mxu0 0.0
        %1518 = vmatpush1.msra.mxu0 0.0
        %1519 = vmatprep.subr.mxu0 0.0
        %1520 = vmatpush1.msra.mxu0 0.0
        %1521 = vmatprep.subr.mxu0 0.0
        %1522 = vmatpush1.msra.mxu0 0.0
        %1523 = vmatprep.subr.mxu0 0.0
        %1524 = vmatpush1.msra.mxu0 0.0
        %1525 = vmatprep.subr.mxu0 0.0
        %1526 = vmatpush1.msra.mxu0 0.0
        %1527 = vmatprep.subr.mxu0 0.0
        %1528 = vmatpush1.msra.mxu0 0.0
        %1529 = vmatprep.subr.mxu0 0.0
        %1530 = vmatpush1.msra.mxu0 0.0
        %1531 = vmatprep.subr.mxu0 0.0
        %1532 = vmatpush1.msra.mxu0 0.0
        %1533 = vmatprep.subr.mxu0 0.0
        %1534 = vmatpush1.msra.mxu0 0.0
        %1535 = vmatprep.subr.mxu0 0.0
        %1536 = vmatpush1.msra.mxu0 0.0
        %1537 = vmatprep.subr.mxu0 0.0
        %1538 = vmatpush1.msra.mxu0 0.0
        %1539 = vmatprep.subr.mxu0 0.0
        %1540 = vmatpush1.msra.mxu0 0.0
        %1541 = vmatprep.subr.mxu0 0.0
        %1542 = vmatpush1.msra.mxu0 0.0
        %1543 = vmatprep.subr.mxu0 0.0
        %1544 = vmatpush1.msra.mxu0 0.0
        %1545 = vmatprep.subr.mxu0 0.0
        %1546 = vmatpush1.msra.mxu0 0.0
        %1547 = vmatprep.mubr.f32.mxu0 0.0
        %v1548 = vand.u32 %v1277, 4294901760
        %1549 = vmatmul.mubr.f32.gmra.mrb[0].mxu0 %v1548
        %v1550 = vpop.f32.mrb[0].mxu0
        %v1551 = vadd.f32 %v1390, %v1550
        %v1552 = vpop.f32.mrb[0].mxu0
        %1553 = vmatprep.mubr.f32.mxu0 0.0
        %v1554 = vand.u32 %v1278, 4294901760
        %1555 = vmatmul.mubr.f32.gmra.mrb[0].mxu0 %v1554
        %v1556 = vpop.f32.mrb[0].mxu0
        %v1557 = vadd.f32 %v1400, %v1556
        %v1558 = vpop.f32.mrb[0].mxu0
        %1559 = vdwg.mxu0
        %1560 = vmatprep.subr.mxu0 0.0
        %v1561 = vand.u32 %v1279, 4294901760
        %v1562 = vsub.f32 %v1279, %v1561
        %1563 = vmatpush1.msra.mxu0 %v1562
        %1564 = vmatprep.subr.mxu0 0.0
        %v1565 = vand.u32 %v1280, 4294901760
        %v1566 = vsub.f32 %v1280, %v1565
        %1567 = vmatpush1.msra.mxu0 %v1566
        %1568 = vmatprep.subr.mxu0 0.0
        %v1569 = vand.u32 %v1281, 4294901760
        %v1570 = vsub.f32 %v1281, %v1569
        %1571 = vmatpush1.msra.mxu0 %v1570
        %1572 = vmatprep.subr.mxu0 0.0
        %v1573 = vand.u32 %v1282, 4294901760
        %v1574 = vsub.f32 %v1282, %v1573
        %1575 = vmatpush1.msra.mxu0 %v1574
        %1576 = vmatprep.subr.mxu0 0.0
        %v1577 = vand.u32 %v1283, 4294901760
        %v1578 = vsub.f32 %v1283, %v1577
        %1579 = vmatpush1.msra.mxu0 %v1578
        %1580 = vmatprep.subr.mxu0 0.0
        %v1581 = vand.u32 %v1284, 4294901760
        %v1582 = vsub.f32 %v1284, %v1581
        %1583 = vmatpush1.msra.mxu0 %v1582
        %1584 = vmatprep.subr.mxu0 0.0
        %v1585 = vand.u32 %v1285, 4294901760
        %v1586 = vsub.f32 %v1285, %v1585
        %1587 = vmatpush1.msra.mxu0 %v1586
        %1588 = vmatprep.subr.mxu0 0.0
        %v1589 = vand.u32 %v1286, 4294901760
        %v1590 = vsub.f32 %v1286, %v1589
        %1591 = vmatpush1.msra.mxu0 %v1590
        %1592 = vmatprep.subr.mxu0 0.0
        %v1593 = vand.u32 %v1287, 4294901760
        %v1594 = vsub.f32 %v1287, %v1593
        %1595 = vmatpush1.msra.mxu0 %v1594
        %1596 = vmatprep.subr.mxu0 0.0
        %v1597 = vand.u32 %v1288, 4294901760
        %v1598 = vsub.f32 %v1288, %v1597
        %1599 = vmatpush1.msra.mxu0 %v1598
        %1600 = vmatprep.subr.mxu0 0.0
        %v1601 = vand.u32 %v1289, 4294901760
        %v1602 = vsub.f32 %v1289, %v1601
        %1603 = vmatpush1.msra.mxu0 %v1602
        %1604 = vmatprep.subr.mxu0 0.0
        %v1605 = vand.u32 %v1290, 4294901760
        %v1606 = vsub.f32 %v1290, %v1605
        %1607 = vmatpush1.msra.mxu0 %v1606
        %1608 = vmatprep.subr.mxu0 0.0
        %v1609 = vand.u32 %v1291, 4294901760
        %v1610 = vsub.f32 %v1291, %v1609
        %1611 = vmatpush1.msra.mxu0 %v1610
        %1612 = vmatprep.subr.mxu0 0.0
        %v1613 = vand.u32 %v1292, 4294901760
        %v1614 = vsub.f32 %v1292, %v1613
        %1615 = vmatpush1.msra.mxu0 %v1614
        %1616 = vmatprep.subr.mxu0 0.0
        %v1617 = vand.u32 %v1293, 4294901760
        %v1618 = vsub.f32 %v1293, %v1617
        %1619 = vmatpush1.msra.mxu0 %v1618
        %1620 = vmatprep.subr.mxu0 0.0
        %v1621 = vand.u32 %v1294, 4294901760
        %v1622 = vsub.f32 %v1294, %v1621
        %1623 = vmatpush1.msra.mxu0 %v1622
        %1624 = vmatprep.subr.mxu0 0.0
        %1625 = vmatpush1.msra.mxu0 0.0
        %1626 = vmatprep.subr.mxu0 0.0
        %1627 = vmatpush1.msra.mxu0 0.0
        %1628 = vmatprep.subr.mxu0 0.0
        %1629 = vmatpush1.msra.mxu0 0.0
        %1630 = vmatprep.subr.mxu0 0.0
        %1631 = vmatpush1.msra.mxu0 0.0
        %1632 = vmatprep.subr.mxu0 0.0
        %1633 = vmatpush1.msra.mxu0 0.0
        %1634 = vmatprep.subr.mxu0 0.0
        %1635 = vmatpush1.msra.mxu0 0.0
        %1636 = vmatprep.subr.mxu0 0.0
        %1637 = vmatpush1.msra.mxu0 0.0
        %1638 = vmatprep.subr.mxu0 0.0
        %1639 = vmatpush1.msra.mxu0 0.0
        %1640 = vmatprep.subr.mxu0 0.0
        %1641 = vmatpush1.msra.mxu0 0.0
        %1642 = vmatprep.subr.mxu0 0.0
        %1643 = vmatpush1.msra.mxu0 0.0
        %1644 = vmatprep.subr.mxu0 0.0
        %1645 = vmatpush1.msra.mxu0 0.0
        %1646 = vmatprep.subr.mxu0 0.0
        %1647 = vmatpush1.msra.mxu0 0.0
        %1648 = vmatprep.subr.mxu0 0.0
        %1649 = vmatpush1.msra.mxu0 0.0
        %1650 = vmatprep.subr.mxu0 0.0
        %1651 = vmatpush1.msra.mxu0 0.0
        %1652 = vmatprep.subr.mxu0 0.0
        %1653 = vmatpush1.msra.mxu0 0.0
        %1654 = vmatprep.subr.mxu0 0.0
        %1655 = vmatpush1.msra.mxu0 0.0
        %1656 = vmatprep.mubr.f32.mxu0 0.0
        %v1657 = vand.u32 %v1277, 4294901760
        %v1658 = vsub.f32 %v1277, %v1657
        %1659 = vmatmul.mubr.f32.gmra.mrb[0].mxu0 %v1658
        %v1660 = vpop.f32.mrb[0].mxu0
        %v1661 = vadd.f32 %v1551, %v1660
        %v1662 = vpop.f32.mrb[0].mxu0
        %1663 = vmatprep.mubr.f32.mxu0 0.0
        %v1664 = vand.u32 %v1278, 4294901760
        %v1665 = vsub.f32 %v1278, %v1664
        %1666 = vmatmul.mubr.f32.gmra.mrb[0].mxu0 %v1665
        %v1667 = vpop.f32.mrb[0].mxu0
        %v1668 = vadd.f32 %v1557, %v1667
        %v1669 = vpop.f32.mrb[0].mxu0
        %1670 = vdwg.mxu0
        %1671 = vmatprep.subr.mxu0 0.0
        %v1672 = vand.u32 %v1279, 4294901760
        %1673 = vmatpush1.msra.mxu0 %v1672
        %1674 = vmatprep.subr.mxu0 0.0
        %v1675 = vand.u32 %v1280, 4294901760
        %1676 = vmatpush1.msra.mxu0 %v1675
        %1677 = vmatprep.subr.mxu0 0.0
        %v1678 = vand.u32 %v1281, 4294901760
        %1679 = vmatpush1.msra.mxu0 %v1678
        %1680 = vmatprep.subr.mxu0 0.0
        %v1681 = vand.u32 %v1282, 4294901760
        %1682 = vmatpush1.msra.mxu0 %v1681
        %1683 = vmatprep.subr.mxu0 0.0
        %v1684 = vand.u32 %v1283, 4294901760
        %1685 = vmatpush1.msra.mxu0 %v1684
        %1686 = vmatprep.subr.mxu0 0.0
        %v1687 = vand.u32 %v1284, 4294901760
        %1688 = vmatpush1.msra.mxu0 %v1687
        %1689 = vmatprep.subr.mxu0 0.0
        %v1690 = vand.u32 %v1285, 4294901760
        %1691 = vmatpush1.msra.mxu0 %v1690
        %1692 = vmatprep.subr.mxu0 0.0
        %v1693 = vand.u32 %v1286, 4294901760
        %1694 = vmatpush1.msra.mxu0 %v1693
        %1695 = vmatprep.subr.mxu0 0.0
        %v1696 = vand.u32 %v1287, 4294901760
        %1697 = vmatpush1.msra.mxu0 %v1696
        %1698 = vmatprep.subr.mxu0 0.0
        %v1699 = vand.u32 %v1288, 4294901760
        %1700 = vmatpush1.msra.mxu0 %v1699
        %1701 = vmatprep.subr.mxu0 0.0
        %v1702 = vand.u32 %v1289, 4294901760
        %1703 = vmatpush1.msra.mxu0 %v1702
        %1704 = vmatprep.subr.mxu0 0.0
        %v1705 = vand.u32 %v1290, 4294901760
        %1706 = vmatpush1.msra.mxu0 %v1705
        %1707 = vmatprep.subr.mxu0 0.0
        %v1708 = vand.u32 %v1291, 4294901760
        %1709 = vmatpush1.msra.mxu0 %v1708
        %1710 = vmatprep.subr.mxu0 0.0
        %v1711 = vand.u32 %v1292, 4294901760
        %1712 = vmatpush1.msra.mxu0 %v1711
        %1713 = vmatprep.subr.mxu0 0.0
        %v1714 = vand.u32 %v1293, 4294901760
        %1715 = vmatpush1.msra.mxu0 %v1714
        %1716 = vmatprep.subr.mxu0 0.0
        %v1717 = vand.u32 %v1294, 4294901760
        %1718 = vmatpush1.msra.mxu0 %v1717
        %1719 = vmatprep.subr.mxu0 0.0
        %1720 = vmatpush1.msra.mxu0 0.0
        %1721 = vmatprep.subr.mxu0 0.0
        %1722 = vmatpush1.msra.mxu0 0.0
        %1723 = vmatprep.subr.mxu0 0.0
        %1724 = vmatpush1.msra.mxu0 0.0
        %1725 = vmatprep.subr.mxu0 0.0
        %1726 = vmatpush1.msra.mxu0 0.0
        %1727 = vmatprep.subr.mxu0 0.0
        %1728 = vmatpush1.msra.mxu0 0.0
        %1729 = vmatprep.subr.mxu0 0.0
        %1730 = vmatpush1.msra.mxu0 0.0
        %1731 = vmatprep.subr.mxu0 0.0
        %1732 = vmatpush1.msra.mxu0 0.0
        %1733 = vmatprep.subr.mxu0 0.0
        %1734 = vmatpush1.msra.mxu0 0.0
        %1735 = vmatprep.subr.mxu0 0.0
        %1736 = vmatpush1.msra.mxu0 0.0
        %1737 = vmatprep.subr.mxu0 0.0
        %1738 = vmatpush1.msra.mxu0 0.0
        %1739 = vmatprep.subr.mxu0 0.0
        %1740 = vmatpush1.msra.mxu0 0.0
        %1741 = vmatprep.subr.mxu0 0.0
        %1742 = vmatpush1.msra.mxu0 0.0
        %1743 = vmatprep.subr.mxu0 0.0
        %1744 = vmatpush1.msra.mxu0 0.0
        %1745 = vmatprep.subr.mxu0 0.0
        %1746 = vmatpush1.msra.mxu0 0.0
        %1747 = vmatprep.subr.mxu0 0.0
        %1748 = vmatpush1.msra.mxu0 0.0
        %1749 = vmatprep.subr.mxu0 0.0
        %1750 = vmatpush1.msra.mxu0 0.0
        %1751 = vmatprep.mubr.f32.mxu0 0.0
        %v1752 = vand.u32 %v1277, 4294901760
        %v1753 = vsub.f32 %v1277, %v1752
        %v1754 = vand.u32 %v1753, 4294901760
        %1755 = vmatmul.mubr.f32.gmra.mrb[0].mxu0 %v1754
        %v1756 = vpop.f32.mrb[0].mxu0
        %v1757 = vadd.f32 %v1661, %v1756
        %v1758 = vpop.f32.mrb[0].mxu0
        %1759 = vmatprep.mubr.f32.mxu0 0.0
        %v1760 = vand.u32 %v1278, 4294901760
        %v1761 = vsub.f32 %v1278, %v1760
        %v1762 = vand.u32 %v1761, 4294901760
        %1763 = vmatmul.mubr.f32.gmra.mrb[0].mxu0 %v1762
        %v1764 = vpop.f32.mrb[0].mxu0
        %v1765 = vadd.f32 %v1668, %v1764
        %v1766 = vpop.f32.mrb[0].mxu0
        %1767 = vdwg.mxu0
        %1768 = vmatprep.subr.mxu0 0.0
        %v1769 = vand.u32 %v1279, 4294901760
        %v1770 = vsub.f32 %v1279, %v1769
        %v1771 = vand.u32 %v1770, 4294901760
        %1772 = vmatpush1.msra.mxu0 %v1771
        %1773 = vmatprep.subr.mxu0 0.0
        %v1774 = vand.u32 %v1280, 4294901760
        %v1775 = vsub.f32 %v1280, %v1774
        %v1776 = vand.u32 %v1775, 4294901760
        %1777 = vmatpush1.msra.mxu0 %v1776
        %1778 = vmatprep.subr.mxu0 0.0
        %v1779 = vand.u32 %v1281, 4294901760
        %v1780 = vsub.f32 %v1281, %v1779
        %v1781 = vand.u32 %v1780, 4294901760
        %1782 = vmatpush1.msra.mxu0 %v1781
        %1783 = vmatprep.subr.mxu0 0.0
        %v1784 = vand.u32 %v1282, 4294901760
        %v1785 = vsub.f32 %v1282, %v1784
        %v1786 = vand.u32 %v1785, 4294901760
        %1787 = vmatpush1.msra.mxu0 %v1786
        %1788 = vmatprep.subr.mxu0 0.0
        %v1789 = vand.u32 %v1283, 4294901760
        %v1790 = vsub.f32 %v1283, %v1789
        %v1791 = vand.u32 %v1790, 4294901760
        %1792 = vmatpush1.msra.mxu0 %v1791
        %1793 = vmatprep.subr.mxu0 0.0
        %v1794 = vand.u32 %v1284, 4294901760
        %v1795 = vsub.f32 %v1284, %v1794
        %v1796 = vand.u32 %v1795, 4294901760
        %1797 = vmatpush1.msra.mxu0 %v1796
        %1798 = vmatprep.subr.mxu0 0.0
        %v1799 = vand.u32 %v1285, 4294901760
        %v1800 = vsub.f32 %v1285, %v1799
        %v1801 = vand.u32 %v1800, 4294901760
        %1802 = vmatpush1.msra.mxu0 %v1801
        %1803 = vmatprep.subr.mxu0 0.0
        %v1804 = vand.u32 %v1286, 4294901760
        %v1805 = vsub.f32 %v1286, %v1804
        %v1806 = vand.u32 %v1805, 4294901760
        %1807 = vmatpush1.msra.mxu0 %v1806
        %1808 = vmatprep.subr.mxu0 0.0
        %v1809 = vand.u32 %v1287, 4294901760
        %v1810 = vsub.f32 %v1287, %v1809
        %v1811 = vand.u32 %v1810, 4294901760
        %1812 = vmatpush1.msra.mxu0 %v1811
        %1813 = vmatprep.subr.mxu0 0.0
        %v1814 = vand.u32 %v1288, 4294901760
        %v1815 = vsub.f32 %v1288, %v1814
        %v1816 = vand.u32 %v1815, 4294901760
        %1817 = vmatpush1.msra.mxu0 %v1816
        %1818 = vmatprep.subr.mxu0 0.0
        %v1819 = vand.u32 %v1289, 4294901760
        %v1820 = vsub.f32 %v1289, %v1819
        %v1821 = vand.u32 %v1820, 4294901760
        %1822 = vmatpush1.msra.mxu0 %v1821
        %1823 = vmatprep.subr.mxu0 0.0
        %v1824 = vand.u32 %v1290, 4294901760
        %v1825 = vsub.f32 %v1290, %v1824
        %v1826 = vand.u32 %v1825, 4294901760
        %1827 = vmatpush1.msra.mxu0 %v1826
        %1828 = vmatprep.subr.mxu0 0.0
        %v1829 = vand.u32 %v1291, 4294901760
        %v1830 = vsub.f32 %v1291, %v1829
        %v1831 = vand.u32 %v1830, 4294901760
        %1832 = vmatpush1.msra.mxu0 %v1831
        %1833 = vmatprep.subr.mxu0 0.0
        %v1834 = vand.u32 %v1292, 4294901760
        %v1835 = vsub.f32 %v1292, %v1834
        %v1836 = vand.u32 %v1835, 4294901760
        %1837 = vmatpush1.msra.mxu0 %v1836
        %1838 = vmatprep.subr.mxu0 0.0
        %v1839 = vand.u32 %v1293, 4294901760
        %v1840 = vsub.f32 %v1293, %v1839
        %v1841 = vand.u32 %v1840, 4294901760
        %1842 = vmatpush1.msra.mxu0 %v1841
        %1843 = vmatprep.subr.mxu0 0.0
        %v1844 = vand.u32 %v1294, 4294901760
        %v1845 = vsub.f32 %v1294, %v1844
        %v1846 = vand.u32 %v1845, 4294901760
        %1847 = vmatpush1.msra.mxu0 %v1846
        %1848 = vmatprep.subr.mxu0 0.0
        %1849 = vmatpush1.msra.mxu0 0.0
        %1850 = vmatprep.subr.mxu0 0.0
        %1851 = vmatpush1.msra.mxu0 0.0
        %1852 = vmatprep.subr.mxu0 0.0
        %1853 = vmatpush1.msra.mxu0 0.0
        %1854 = vmatprep.subr.mxu0 0.0
        %1855 = vmatpush1.msra.mxu0 0.0
        %1856 = vmatprep.subr.mxu0 0.0
        %1857 = vmatpush1.msra.mxu0 0.0
        %1858 = vmatprep.subr.mxu0 0.0
        %1859 = vmatpush1.msra.mxu0 0.0
        %1860 = vmatprep.subr.mxu0 0.0
        %1861 = vmatpush1.msra.mxu0 0.0
        %1862 = vmatprep.subr.mxu0 0.0
        %1863 = vmatpush1.msra.mxu0 0.0
        %1864 = vmatprep.subr.mxu0 0.0
        %1865 = vmatpush1.msra.mxu0 0.0
        %1866 = vmatprep.subr.mxu0 0.0
        %1867 = vmatpush1.msra.mxu0 0.0
        %1868 = vmatprep.subr.mxu0 0.0
        %1869 = vmatpush1.msra.mxu0 0.0
        %1870 = vmatprep.subr.mxu0 0.0
        %1871 = vmatpush1.msra.mxu0 0.0
        %1872 = vmatprep.subr.mxu0 0.0
        %1873 = vmatpush1.msra.mxu0 0.0
        %1874 = vmatprep.subr.mxu0 0.0
        %1875 = vmatpush1.msra.mxu0 0.0
        %1876 = vmatprep.subr.mxu0 0.0
        %1877 = vmatpush1.msra.mxu0 0.0
        %1878 = vmatprep.subr.mxu0 0.0
        %1879 = vmatpush1.msra.mxu0 0.0
        %1880 = vmatprep.mubr.f32.mxu0 0.0
        %v1881 = vand.u32 %v1277, 4294901760
        %1882 = vmatmul.mubr.f32.gmra.mrb[0].mxu0 %v1881
        %v1883 = vpop.f32.mrb[0].mxu0
        %v1884 = vadd.f32 %v1757, %v1883
        %v1885 = vpop.f32.mrb[0].mxu0
        %1886 = vmatprep.mubr.f32.mxu0 0.0
        %v1887 = vand.u32 %v1278, 4294901760
        %1888 = vmatmul.mubr.f32.gmra.mrb[0].mxu0 %v1887
        %v1889 = vpop.f32.mrb[0].mxu0
        %v1890 = vadd.f32 %v1765, %v1889
        %v1891 = vpop.f32.mrb[0].mxu0
        %1892 = vdwg.mxu0
        %1893 = vmatprep.subr.mxu0 0.0
        %v1894 = vand.u32 %v1279, 4294901760
        %1895 = vmatpush1.msra.mxu0 %v1894
        %1896 = vmatprep.subr.mxu0 0.0
        %v1897 = vand.u32 %v1280, 4294901760
        %1898 = vmatpush1.msra.mxu0 %v1897
        %1899 = vmatprep.subr.mxu0 0.0
        %v1900 = vand.u32 %v1281, 4294901760
        %1901 = vmatpush1.msra.mxu0 %v1900
        %1902 = vmatprep.subr.mxu0 0.0
        %v1903 = vand.u32 %v1282, 4294901760
        %1904 = vmatpush1.msra.mxu0 %v1903
        %1905 = vmatprep.subr.mxu0 0.0
        %v1906 = vand.u32 %v1283, 4294901760
        %1907 = vmatpush1.msra.mxu0 %v1906
        %1908 = vmatprep.subr.mxu0 0.0
        %v1909 = vand.u32 %v1284, 4294901760
        %1910 = vmatpush1.msra.mxu0 %v1909
        %1911 = vmatprep.subr.mxu0 0.0
        %v1912 = vand.u32 %v1285, 4294901760
        %1913 = vmatpush1.msra.mxu0 %v1912
        %1914 = vmatprep.subr.mxu0 0.0
        %v1915 = vand.u32 %v1286, 4294901760
        %1916 = vmatpush1.msra.mxu0 %v1915
        %1917 = vmatprep.subr.mxu0 0.0
        %v1918 = vand.u32 %v1287, 4294901760
        %1919 = vmatpush1.msra.mxu0 %v1918
        %1920 = vmatprep.subr.mxu0 0.0
        %v1921 = vand.u32 %v1288, 4294901760
        %1922 = vmatpush1.msra.mxu0 %v1921
        %1923 = vmatprep.subr.mxu0 0.0
        %v1924 = vand.u32 %v1289, 4294901760
        %1925 = vmatpush1.msra.mxu0 %v1924
        %1926 = vmatprep.subr.mxu0 0.0
        %v1927 = vand.u32 %v1290, 4294901760
        %1928 = vmatpush1.msra.mxu0 %v1927
        %1929 = vmatprep.subr.mxu0 0.0
        %v1930 = vand.u32 %v1291, 4294901760
        %1931 = vmatpush1.msra.mxu0 %v1930
        %1932 = vmatprep.subr.mxu0 0.0
        %v1933 = vand.u32 %v1292, 4294901760
        %1934 = vmatpush1.msra.mxu0 %v1933
        %1935 = vmatprep.subr.mxu0 0.0
        %v1936 = vand.u32 %v1293, 4294901760
        %1937 = vmatpush1.msra.mxu0 %v1936
        %1938 = vmatprep.subr.mxu0 0.0
        %v1939 = vand.u32 %v1294, 4294901760
        %1940 = vmatpush1.msra.mxu0 %v1939
        %1941 = vmatprep.subr.mxu0 0.0
        %1942 = vmatpush1.msra.mxu0 0.0
        %1943 = vmatprep.subr.mxu0 0.0
        %1944 = vmatpush1.msra.mxu0 0.0
        %1945 = vmatprep.subr.mxu0 0.0
        %1946 = vmatpush1.msra.mxu0 0.0
        %1947 = vmatprep.subr.mxu0 0.0
        %1948 = vmatpush1.msra.mxu0 0.0
        %1949 = vmatprep.subr.mxu0 0.0
        %1950 = vmatpush1.msra.mxu0 0.0
        %1951 = vmatprep.subr.mxu0 0.0
        %1952 = vmatpush1.msra.mxu0 0.0
        %1953 = vmatprep.subr.mxu0 0.0
        %1954 = vmatpush1.msra.mxu0 0.0
        %1955 = vmatprep.subr.mxu0 0.0
        %1956 = vmatpush1.msra.mxu0 0.0
        %1957 = vmatprep.subr.mxu0 0.0
        %1958 = vmatpush1.msra.mxu0 0.0
        %1959 = vmatprep.subr.mxu0 0.0
        %1960 = vmatpush1.msra.mxu0 0.0
        %1961 = vmatprep.subr.mxu0 0.0
        %1962 = vmatpush1.msra.mxu0 0.0
        %1963 = vmatprep.subr.mxu0 0.0
        %1964 = vmatpush1.msra.mxu0 0.0
        %1965 = vmatprep.subr.mxu0 0.0
        %1966 = vmatpush1.msra.mxu0 0.0
        %1967 = vmatprep.subr.mxu0 0.0
        %1968 = vmatpush1.msra.mxu0 0.0
        %1969 = vmatprep.subr.mxu0 0.0
        %1970 = vmatpush1.msra.mxu0 0.0
        %1971 = vmatprep.subr.mxu0 0.0
        %1972 = vmatpush1.msra.mxu0 0.0
        %1973 = vmatprep.mubr.f32.mxu0 0.0
        %v1974 = vand.u32 %v1277, 4294901760
        %1975 = vmatmul.mubr.f32.gmra.mrb[0].mxu0 %v1974
        %v1976 = vpop.f32.mrb[0].mxu0
        %v1977 = vadd.f32 %v1884, %v1976
        %v1978 = vpop.f32.mrb[0].mxu0
        %1979 = vmatprep.mubr.f32.mxu0 0.0
        %v1980 = vand.u32 %v1278, 4294901760
        %1981 = vmatmul.mubr.f32.gmra.mrb[0].mxu0 %v1980
        %v1982 = vpop.f32.mrb[0].mxu0
        %v1983 = vadd.f32 %v1890, %v1982
        %v1984 = vpop.f32.mrb[0].mxu0
        %1985 = vdwg.mxu0
        %v1986 = vadd.f32 %v1977, %v393
        %v1987 = vadd.f32 %v1983, %v394
        %v1988 = vmax.f32 %v1986, 0.0
        %v1989 = vmax.f32 %v1987, 0.0
        %1990 = vst [vmem:[%s392] sm:$0xff] %v1988
        %1991 = vst [vmem:[%s392 + $0x8] sm:$0xff] %v1989
        %s1992 = sand.u32 %s230, 1
        %s1993 = scalar_lea.sflag [#allocation4], %s1992
        %s1994 = sand.u32 %s230, 1
        %s1995 = smul.addr %s1994, 16
        %s1996 = scalar_lea.vmem [#allocation10], %s1995
        // Predicated region
        $region73: #{tpu_custom_call.1} parent=55 // pred_check
          %p1997 = pneg %p240
        $region74: #{tpu_custom_call.1} parent=55 // pred_check_branch
          %1999 = sbr.rel (%p1997) target = $region76
        $region75: #{tpu_custom_call.1} parent=55 // pred_region
          %s2001 = ssub.s32 256, 256
          %2002 = vsyncadd %s1993, %s2001
          %s2003 = smul.addr %s28, 2
          %s2004 = smul.addr %s2003, 128
          %s2005 = scalar_lea.hbm %s9, %s2004
          %s2006 = sshll.u32 %s1996, 4
          %s2007 = int_to_ptr.vmem [resolvable:$true] %s2006
          %2012 = dma.vmem_to_hbm [thread:$0]  %s2007, 256, %s2005, %s1993, 128, 128, 8
        $region76: #{tpu_custom_call.1} parent=55 // pred_fallthru
          _
      $region56: #{tpu_custom_call.1} parent=5 // pred_fallthru
        _
      %p2013 = scmp.le.s32.totalorder 2, %s23
      // Predicated region
      $region77: #{tpu_custom_call.1} parent=5 // pred_check
        %p2014 = pneg %p2013
      $region78: #{tpu_custom_call.1} parent=5 // pred_check_branch
        %2016 = sbr.rel (%p2014) target = $region80
      $region79: #{tpu_custom_call.1} parent=5 // pred_region
        %s2017 = ssub.s32 %s23, 2
        // Predicated region
        $region81: #{tpu_custom_call.1} parent=79 // pred_check
          %p2018 = pneg %p246
        $region82: #{tpu_custom_call.1} parent=79 // pred_check_branch
          %2020 = sbr.rel (%p2018) target = $region84
        $region83: #{tpu_custom_call.1} parent=79 // pred_region
          %s2021 = sand.u32 %s231, 1
          %s2022 = scalar_lea.sflag [#allocation4], %s2021
          %s2023 = sand.u32 %s231, 1
          %s2024 = smul.addr %s2023, 16
          %s2025 = scalar_lea.vmem [#allocation10], %s2024
          %2026 = dma.done %s2022, 256
        $region84: #{tpu_custom_call.1} parent=79 // pred_fallthru
          _
      $region80: #{tpu_custom_call.1} parent=5 // pred_fallthru
        _
    $region6: #{tpu_custom_call.1} parent=1 // loop_footer
      %s27 = sadd.s32 1, %s23
    $region7: #{tpu_custom_call.1} parent=1 // loop_footer_branch
      %22 = sbr.rel target = $region3
    $region8: #{tpu_custom_call.1} parent=1 // loop_exit
      _
    %2027 = vsyncpa [#allocation3], 1
    %s2028 = scalar_lea.sflag [#allocation3], 1
    %2029 = vsyncpa %s2028, 1
    %2030 = vsyncpa [#allocation6], 1
    %2031 = vsyncpa [#allocation9], 1
    %2032 = vsyncpa [#allocation4], 1
    %s2033 = scalar_lea.sflag [#allocation4], 1
    %2034 = vsyncpa %s2033, 1

</llo_original>
